<compile_context>
chip_gen: v6e
topology: v6e:2x2x1
jax: 0.10.0
libtpu: 0.0.40
codegen_flags: <defaults>
</compile_context>

<pallas_src>
import jax
import jax.numpy as jnp
from jax.experimental import pallas as pl
from jax.experimental.pallas import tpu as pltpu

LANE = 128       # lane tile (last dim)
SUBLANE = 8      # f32 sublane tile (second-to-last dim)
TILE_V_TARGET = 2048   # v7x-safe; use 8192-16384 on v5e/v6e (bigger VMEM)


def _round_up(x, m):
    return (x + m - 1) // m * m


def _pad_to(x, shape, value=0.0):
    pads = [(0, t - s) for s, t in zip(x.shape, shape)]
    return jnp.pad(x, pads, constant_values=value)


def _tile_v_for(V):
    return min(TILE_V_TARGET, _round_up(V, LANE))


# ----------------------------------------------------------------------------
# Kernel 1: bidirectional GRU cell + 'dot' attention + concat Linear (grid-less)
# ----------------------------------------------------------------------------
def gru_attn_concat_kernel(
    x_ref,       # (Bp, Hp)       bf16  embedded token
    h0_ref,      # (2, Bp, Hp)    f32   previous hidden [fwd, bwd]
    enc_ref,     # (Bp, S, Hp)    bf16  encoder outputs, batch-major
    wi_ref,      # (Hp, 6*Hp)     bf16  fused input->gates weights [fwd | bwd]
    wh_ref,      # (2, Hp, 3*Hp)  bf16  hidden->gates weights per direction
    bi_ref,      # (1, 6*Hp)      f32
    bh_ref,      # (2, 1, 3*Hp)   f32
    wc_ref,      # (2, Hp, Hp)    bf16  concat Linear split as [W_rnn, W_ctx]
    bc_ref,      # (1, Hp)        f32
    concat_ref,  # (Bp, Hp)       bf16  tanh(W_c [rnn ; ctx])   (output)
    h_ref,       # (2, Bp, Hp)    f32   new hidden              (output, aliased)
):
    Hp = x_ref.shape[1]
    G = 3 * Hp

    x = x_ref[...]                                    # bf16 (Bp, Hp)

    # Fused input->gates matmul for both directions: (Bp, 6Hp)
    gi = jnp.dot(x, wi_ref[...], preferred_element_type=jnp.float32) + bi_ref[...]

    def gru_dir(d):
        # Per-direction hidden->gates matmul, unrolled (clean MXU lowering).
        h_d = h0_ref[d]                               # f32 (Bp, Hp)
        gh = jnp.dot(h_d.astype(jnp.bfloat16), wh_ref[d],
                     preferred_element_type=jnp.float32) + bh_ref[d]
        gi_d = gi[:, d * G:(d + 1) * G]
        # PyTorch gate order along the last dim: [r, z, n]
        r = jax.nn.sigmoid(gi_d[:, 0:Hp] + gh[:, 0:Hp])
        z = jax.nn.sigmoid(gi_d[:, Hp:2 * Hp] + gh[:, Hp:2 * Hp])
        n = jnp.tanh(gi_d[:, 2 * Hp:3 * Hp] + r * gh[:, 2 * Hp:3 * Hp])
        return (1.0 - z) * n + z * h_d

    hf = gru_dir(0)
    hb = gru_dir(1)
    h_ref[0, :, :] = hf
    h_ref[1, :, :] = hb

    # rnn_output[:, :, :H] + rnn_output[:, :, H:]  (seq_len == 1)
    rnn_out = hf + hb                                 # (Bp, Hp) f32

    # --- 'dot' attention (batched matmuls; negligible MXU occupancy here since
    #     the big w_o matmul lives in a separate streamed call)
    enc = enc_ref[...]                                # bf16 (Bp, S, Hp)
    rnn_q = rnn_out[:, None, :].astype(jnp.bfloat16)  # (Bp, 1, Hp)
    scores = jnp.einsum("bqh,bsh->bqs", rnn_q, enc,
                        preferred_element_type=jnp.float32)        # (Bp, 1, S)
    scores = scores - jnp.max(scores, axis=-1, keepdims=True)
    e = jnp.exp(scores)
    inv_den = pl.reciprocal(jnp.sum(e, axis=-1, keepdims=True), approx=True)
    attn = e * inv_den                                              # (Bp, 1, S)
    ctx = jnp.einsum("bqs,bsh->bqh", attn.astype(jnp.bfloat16), enc,
                     preferred_element_type=jnp.float32)           # (Bp, 1, Hp)
    context = ctx[:, 0, :]                                          # (Bp, Hp)

    # --- Luong eq. 5: tanh(W_c [rnn ; ctx]) as two accumulating dots (no concat copy)
    pre = (jnp.dot(rnn_out.astype(jnp.bfloat16), wc_ref[0],
                   preferred_element_type=jnp.float32)
           + jnp.dot(context.astype(jnp.bfloat16), wc_ref[1],
                     preferred_element_type=jnp.float32)
           + bc_ref[...])
    concat_ref[...] = jnp.tanh(pre).astype(jnp.bfloat16)            # (Bp, Hp)


# ----------------------------------------------------------------------------
# Kernel 2: output projection, streamed over V tiles (double-buffered w_o DMA)
# ----------------------------------------------------------------------------
def out_proj_kernel(co_ref, wo_ref, bo_ref, logits_ref):
    # co:(Bp,Hp) bf16   wo:(Hp,TILE_V) bf16   bo:(1,TILE_V) f32   logits:(Bp,TILE_V) f32
    logits_ref[...] = (
        jnp.dot(co_ref[...], wo_ref[...], preferred_element_type=jnp.float32)
        + bo_ref[...]
    )


# ----------------------------------------------------------------------------
# One-time packing (weights / encoder outputs / hidden state)
# ----------------------------------------------------------------------------
def _gru_weight_t(w, H, Hp):
    """(3H, H) PyTorch GRU weight -> (Hp, 3Hp) transposed, gate blocks lane-padded."""
    blocks = [_pad_to(w[g * H:(g + 1) * H, :].T, (Hp, Hp)) for g in range(3)]
    return jnp.concatenate(blocks, axis=1)


def _gru_bias(b, H, Hp):
    """(3H,) -> (3Hp,), each gate block lane-padded with zeros."""
    return jnp.concatenate([_pad_to(b[g * H:(g + 1) * H], (Hp,)) for g in range(3)])


def prepare_decoder_params(params):
    """Pack weights once (outside the decode loop): transpose, pad to lane/tile
    multiples, fuse, cast to bf16.  Padding is exact (zeros everywhere)."""
    H = params["w_concat"].shape[0]
    V = params["b_out"].shape[0]
    Hp = _round_up(H, LANE)
    tile_v = _tile_v_for(V)
    Vp = _round_up(V, tile_v)
    wdt = jnp.bfloat16

    w_i = jnp.concatenate(
        [_gru_weight_t(params["w_ih_f"], H, Hp),
         _gru_weight_t(params["w_ih_b"], H, Hp)], axis=1).astype(wdt)       # (Hp, 6Hp)
    w_h = jnp.stack(
        [_gru_weight_t(params["w_hh_f"], H, Hp),
         _gru_weight_t(params["w_hh_b"], H, Hp)], axis=0).astype(wdt)       # (2, Hp, 3Hp)
    b_i = jnp.concatenate(
        [_gru_bias(params["b_ih_f"], H, Hp),
         _gru_bias(params["b_ih_b"], H, Hp)])[None, :].astype(jnp.float32)  # (1, 6Hp)
    b_h = jnp.stack(
        [_gru_bias(params["b_hh_f"], H, Hp),
         _gru_bias(params["b_hh_b"], H, Hp)], axis=0)[:, None, :].astype(jnp.float32)

    wc_t = params["w_concat"].T                                             # (2H, H)
    w_c = jnp.stack(
        [_pad_to(wc_t[:H], (Hp, Hp)), _pad_to(wc_t[H:], (Hp, Hp))],
        axis=0).astype(wdt)                                                 # (2, Hp, Hp)
    b_c = _pad_to(params["b_concat"], (Hp,))[None, :].astype(jnp.float32)

    w_o = _pad_to(params["w_out"].T, (Hp, Vp)).astype(wdt)                  # (Hp, Vp)
    b_o = _pad_to(params["b_out"], (Vp,))[None, :].astype(jnp.float32)      # (1, Vp)

    emb = _pad_to(params["embedding"],
                  (params["embedding"].shape[0], Hp)).astype(wdt)           # (Vocab, Hp)

    return dict(embedding=emb, w_i=w_i, w_h=w_h, b_i=b_i, b_h=b_h,
                w_c=w_c, b_c=b_c, w_o=w_o, b_o=b_o)


def prepare_encoder_outputs(encoder_outputs, hidden_size):
    """(S, B, H) f32 -> (Bp, S, Hp) bf16, done ONCE per sequence (not per step)."""
    S, B, _ = encoder_outputs.shape
    Hp = _round_up(hidden_size, LANE)
    Bp = _round_up(B, SUBLANE)
    enc = jnp.transpose(encoder_outputs, (1, 0, 2)).astype(jnp.bfloat16)
    return _pad_to(enc, (Bp, S, Hp))


def prepare_hidden(last_hidden, hidden_size):
    """(2, B, H) -> padded (2, Bp, Hp) f32; keep it padded across decode steps."""
    _, B, _ = last_hidden.shape
    Hp = _round_up(hidden_size, LANE)
    Bp = _round_up(B, SUBLANE)
    return _pad_to(last_hidden.astype(jnp.float32), (2, Bp, Hp))


# ----------------------------------------------------------------------------
# Per-step wrapper
# ----------------------------------------------------------------------------
def luong_attn_decoder_step(input_step, h_padded, enc_packed, packed, dims):
    """input_step:(1,B) int32, h_padded:(2,Bp,Hp) f32, enc_packed:(Bp,S,Hp) bf16.
    Returns (softmax probs (B,V) f32, new padded hidden (2,Bp,Hp) f32)."""
    H, V = dims
    B = input_step.shape[1]
    Bp = _round_up(B, SUBLANE)
    Hp = packed["w_i"].shape[0]
    Vp = packed["w_o"].shape[1]
    tile_v = min(TILE_V_TARGET, Vp)
    n_v = Vp // tile_v
    assert h_padded.shape == (2, Bp, Hp) and enc_packed.shape[0] == Bp

    # Embedding gather (XLA) + batch padding; everything else is pre-packed.
    x = _pad_to(packed["embedding"][input_step[0]], (Bp, Hp))               # bf16

    vmem = pl.BlockSpec(memory_space=pltpu.MemorySpace.VMEM)

    # --- call 1: GRU + attention + concat (small, grid-less); hidden state is
    #     aliased in-place (read-modify-write, no extra HBM buffer per step).
    concat_bf, h_new = pl.pallas_call(
        gru_attn_concat_kernel,
        out_shape=(
            jax.ShapeDtypeStruct((Bp, Hp), jnp.bfloat16),
            jax.ShapeDtypeStruct((2, Bp, Hp), jnp.float32),
        ),
        in_specs=[vmem] * 9,
        out_specs=(vmem, vmem),
        input_output_aliases={1: 1},   # h_padded (input 1) -> h_new (output 1)
        compiler_params=pltpu.CompilerParams(vmem_limit_bytes=32 * 1024 * 1024),
    )(x, h_padded, enc_packed, packed["w_i"], packed["w_h"],
      packed["b_i"], packed["b_h"], packed["w_c"], packed["b_c"])

    # --- call 2: output projection streamed over V tiles.  Each tile is
    #     independent ("parallel" -> v7x megacore splits w_o tiles across TCs);
    #     softmax normalization is finished in the wrapper.
    logits_p = pl.pallas_call(
        out_proj_kernel,
        out_shape=jax.ShapeDtypeStruct((Bp, Vp), jnp.float32),
        grid=(n_v,),
        in_specs=[
            pl.BlockSpec((Bp, Hp), lambda j: (0, 0)),      # concat_out: resident
            pl.BlockSpec((Hp, tile_v), lambda j: (0, j)),  # w_o tile (double-buffered)
            pl.BlockSpec((1, tile_v), lambda j: (0, j)),   # b_o tile
        ],
        out_specs=pl.BlockSpec((Bp, tile_v), lambda j: (0, j)),
        compiler_params=pltpu.CompilerParams(
            dimension_semantics=("parallel",),
            # plenty for TILE_V=2048 (v7x-safe); raise towards ~100 MiB on
            # v5e/v6e together with a larger TILE_V / pl.Buffered(3) on w_o.
            vmem_limit_bytes=48 * 1024 * 1024),
    )(concat_bf, packed["w_o"], packed["b_o"])

    probs = jax.nn.softmax(logits_p[:B, :V], axis=1)
    return probs, h_new


decoder_step = jax.jit(luong_attn_decoder_step, static_argnums=4)


# ----------------------------------------------------------------------------
# Pure-JAX reference (same semantics, same precision policy: bf16 matmul
# operands, f32 accumulation) — used only for verification.
# ----------------------------------------------------------------------------
def ref_forward(input_step, last_hidden, encoder_outputs, p):
    H = p["w_concat"].shape[0]
    bf = jnp.bfloat16

    def mm(a, b):
        return jnp.dot(a.astype(bf), b.astype(bf), preferred_element_type=jnp.float32)

    emb = p["embedding"][input_step[0]]

    def cell(x, h, wi, wh, bi, bh):
        gi = mm(x, wi.T) + bi
        gh = mm(h, wh.T) + bh
        r = jax.nn.sigmoid(gi[:, :H] + gh[:, :H])
        z = jax.nn.sigmoid(gi[:, H:2 * H] + gh[:, H:2 * H])
        n = jnp.tanh(gi[:, 2 * H:] + r * gh[:, 2 * H:])
        return (1.0 - z) * n + z * h

    hf = cell(emb, last_hidden[0], p["w_ih_f"], p["w_hh_f"], p["b_ih_f"], p["b_hh_f"])
    hb = cell(emb, last_hidden[1], p["w_ih_b"], p["w_hh_b"], p["b_ih_b"], p["b_hh_b"])
    rnn = hf + hb
    enc = jnp.transpose(encoder_outputs, (1, 0, 2))               # (B, S, H)
    scores = jnp.einsum("bh,bsh->bs", rnn.astype(bf), enc.astype(bf),
                        preferred_element_type=jnp.float32)
    attn = jax.nn.softmax(scores, axis=1)
    ctx = jnp.einsum("bs,bsh->bh", attn.astype(bf), enc.astype(bf),
                     preferred_element_type=jnp.float32)
    co = jnp.tanh(mm(rnn, p["w_concat"][:, :H].T)
                  + mm(ctx, p["w_concat"][:, H:].T) + p["b_concat"])
    logits = mm(co, p["w_out"].T) + p["b_out"]
    out = jax.nn.softmax(logits, axis=1)
    return out, jnp.stack([hf, hb], axis=0)


def make_params(key, hidden_size, output_size):
    H, V = hidden_size, output_size
    names_shapes = [
        ("embedding", (V, H)),
        ("w_ih_f", (3 * H, H)), ("w_hh_f", (3 * H, H)),
        ("b_ih_f", (3 * H,)), ("b_hh_f", (3 * H,)),
        ("w_ih_b", (3 * H, H)), ("w_hh_b", (3 * H, H)),
        ("b_ih_b", (3 * H,)), ("b_hh_b", (3 * H,)),
        ("w_concat", (H, 2 * H)), ("b_concat", (H,)),
        ("w_out", (V, H)), ("b_out", (V,)),
    ]
    keys = jax.random.split(key, len(names_shapes))
    scale = 1.0 / jnp.sqrt(jnp.float32(H))
    return {name: scale * jax.random.normal(k, shape, dtype=jnp.float32)
            for k, (name, shape) in zip(keys, names_shapes)}


if __name__ == "__main__":
    B, H, V, S = 2, 32, 64, 8          # batch, hidden_size, output_size, encoder seq len
    key = jax.random.PRNGKey(0)
    kp, ki, kh, ke = jax.random.split(key, 4)

    params = make_params(kp, H, V)
    input_step = jax.random.randint(ki, (1, B), 0, V, dtype=jnp.int32)     # (1, B)
    last_hidden = jax.random.normal(kh, (2, B, H), dtype=jnp.float32)      # (2, B, H)
    encoder_outputs = jax.random.normal(ke, (S, B, H), dtype=jnp.float32)  # (S, B, H)

    # One-time (per sequence) packing: weights, encoder outputs, padded hidden.
    packed = prepare_decoder_params(params)
    enc_packed = prepare_encoder_outputs(encoder_outputs, H)
    h_padded = prepare_hidden(last_hidden, H)

    out, h_new_padded = decoder_step(input_step, h_padded, enc_packed, packed, (H, V))
    out = jax.block_until_ready(out)
    h_new_padded = jax.block_until_ready(h_new_padded)
    hidden = h_new_padded[:, :B, :H]

    out_ref, hidden_ref = ref_forward(input_step, last_hidden, encoder_outputs, params)
    assert out.shape == (B, V) and hidden.shape == (2, B, H)
    assert jnp.allclose(out, out_ref, rtol=2e-3, atol=2e-3), \
        float(jnp.max(jnp.abs(out - out_ref)))
    assert jnp.allclose(hidden, hidden_ref, rtol=2e-3, atol=2e-3), \
        float(jnp.max(jnp.abs(hidden - hidden_ref)))

    print("KERNEL_OK")
</pallas_src>

<mosaic_0001>
module attributes {stable_mosaic.version = 11 : i64} {
  func.func @out_proj_kernel(%arg0: i32, %arg1: memref<8x128xbf16, #tpu.memory_space<vmem>>, %arg2: memref<128x128xbf16, #tpu.memory_space<vmem>>, %arg3: memref<1x128xf32, #tpu.memory_space<vmem>>, %arg4: memref<8x128xf32, #tpu.memory_space<vmem>>) attributes {dimension_semantics = [#tpu.dimension_semantics<parallel>], iteration_bounds = array<i64: 1>, scalar_prefetch = 0 : i64, scratch_operands = 0 : i64, tpu.core_type = #tpu.core_type<tc>, window_params = [{pipeline_mode = #tpu.pipeline_mode<synchronous>, transform_indices = @transform_0, window_bounds = array<i64: 8, 128>}, {transform_indices = @transform_1, window_bounds = array<i64: 128, 128>}, {transform_indices = @transform_2, window_bounds = array<i64: 1, 128>}, {transform_indices = @transform_3, window_bounds = array<i64: 8, 128>}]} {
    %c0 = arith.constant 0 : index
    %c0_0 = arith.constant 0 : index
    %0 = vector.load %arg1[%c0, %c0_0] : memref<8x128xbf16, #tpu.memory_space<vmem>>, vector<8x128xbf16>
    %c0_1 = arith.constant 0 : index
    %c0_2 = arith.constant 0 : index
    %1 = vector.load %arg2[%c0_1, %c0_2] : memref<128x128xbf16, #tpu.memory_space<vmem>>, vector<128x128xbf16>
    %cst = arith.constant dense<0.000000e+00> : vector<8x128xf32>
    %2 = tpu.matmul %0, %1, %cst {dimension_numbers = #tpu.dot_dimension_numbers<[1], [0], [0], [1], [0, 0, 1, 1], [], []>} : vector<8x128xbf16>, vector<128x128xbf16>, vector<8x128xf32> -> vector<8x128xf32>
    %c0_3 = arith.constant 0 : index
    %c0_4 = arith.constant 0 : index
    %3 = vector.load %arg3[%c0_3, %c0_4] : memref<1x128xf32, #tpu.memory_space<vmem>>, vector<1x128xf32>
    %4 = vector.broadcast %3 : vector<1x128xf32> to vector<8x128xf32>
    %5 = arith.addf %2, %4 : vector<8x128xf32>
    %c0_5 = arith.constant 0 : index
    %c0_6 = arith.constant 0 : index
    %6 = vector.load %arg4[%c0_5, %c0_6] : memref<8x128xf32, #tpu.memory_space<vmem>>, vector<8x128xf32>
    tpu.vector_store %arg4[%c0_5, %c0_6], %5 {strides = array<i32>} : memref<8x128xf32, #tpu.memory_space<vmem>>, vector<8x128xf32>,
    return
  }
  func.func @transform_0(%arg0: i32) -> (i32, i32) {
    %c0_i32 = arith.constant 0 : i32
    %c0_i32_0 = arith.constant 0 : i32
    %c0_i32_1 = arith.constant 0 : i32
    return %c0_i32, %c0_i32_0 : i32, i32
  }
  func.func @transform_1(%arg0: i32) -> (i32, i32) {
    %c0_i32 = arith.constant 0 : i32
    %c0_i32_0 = arith.constant 0 : i32
    return %c0_i32, %arg0 : i32, i32
  }
  func.func @transform_2(%arg0: i32) -> (i32, i32) {
    %c0_i32 = arith.constant 0 : i32
    %c0_i32_0 = arith.constant 0 : i32
    return %c0_i32, %arg0 : i32, i32
  }
  func.func @transform_3(%arg0: i32) -> (i32, i32) {
    %c0_i32 = arith.constant 0 : i32
    %c0_i32_0 = arith.constant 0 : i32
    return %c0_i32, %arg0 : i32, i32
  }
}

module attributes {stable_mosaic.version = 11 : i64} {
  func.func @gru_attn_concat_kernel(%arg0: memref<8x128xbf16, #tpu.memory_space<vmem>>, %arg1: memref<2x8x128xf32, #tpu.memory_space<vmem>>, %arg2: memref<8x8x128xbf16, #tpu.memory_space<vmem>>, %arg3: memref<128x768xbf16, #tpu.memory_space<vmem>>, %arg4: memref<2x128x384xbf16, #tpu.memory_space<vmem>>, %arg5: memref<1x768xf32, #tpu.memory_space<vmem>>, %arg6: memref<2x1x384xf32, #tpu.memory_space<vmem>>, %arg7: memref<2x128x128xbf16, #tpu.memory_space<vmem>>, %arg8: memref<1x128xf32, #tpu.memory_space<vmem>>, %arg9: memref<8x128xbf16, #tpu.memory_space<vmem>>, %arg10: memref<2x8x128xf32, #tpu.memory_space<vmem>>) attributes {dimension_semantics = [], scalar_prefetch = 0 : i64, scratch_operands = 0 : i64, tpu.core_type = #tpu.core_type<tc>} {
    %c0 = arith.constant 0 : index
    %c0_0 = arith.constant 0 : index
    %0 = vector.load %arg0[%c0, %c0_0] : memref<8x128xbf16, #tpu.memory_space<vmem>>, vector<8x128xbf16>
    %c0_1 = arith.constant 0 : index
    %c0_2 = arith.constant 0 : index
    %1 = vector.load %arg3[%c0_1, %c0_2] : memref<128x768xbf16, #tpu.memory_space<vmem>>, vector<128x768xbf16>
    %cst = arith.constant dense<0.000000e+00> : vector<8x768xf32>
    %2 = tpu.matmul %0, %1, %cst {dimension_numbers = #tpu.dot_dimension_numbers<[1], [0], [0], [1], [0, 0, 1, 1], [], []>} : vector<8x128xbf16>, vector<128x768xbf16>, vector<8x768xf32> -> vector<8x768xf32>
    %c0_3 = arith.constant 0 : index
    %c0_4 = arith.constant 0 : index
    %3 = vector.load %arg5[%c0_3, %c0_4] : memref<1x768xf32, #tpu.memory_space<vmem>>, vector<1x768xf32>
    %4 = vector.broadcast %3 : vector<1x768xf32> to vector<8x768xf32>
    %5 = arith.addf %2, %4 : vector<8x768xf32>
    %c0_5 = arith.constant 0 : index
    %c0_6 = arith.constant 0 : index
    %c0_7 = arith.constant 0 : index
    %6 = vector.load %arg1[%c0_5, %c0_6, %c0_7] : memref<2x8x128xf32, #tpu.memory_space<vmem>>, vector<1x8x128xf32>
    %7 = vector.shape_cast %6 : vector<1x8x128xf32> to vector<8x128xf32>
    %8 = arith.truncf %7 : vector<8x128xf32> to vector<8x128xbf16>
    %c0_8 = arith.constant 0 : index
    %c0_9 = arith.constant 0 : index
    %c0_10 = arith.constant 0 : index
    %9 = vector.load %arg4[%c0_8, %c0_9, %c0_10] : memref<2x128x384xbf16, #tpu.memory_space<vmem>>, vector<1x128x384xbf16>
    %10 = vector.shape_cast %9 : vector<1x128x384xbf16> to vector<128x384xbf16>
    %cst_11 = arith.constant dense<0.000000e+00> : vector<8x384xf32>
    %11 = tpu.matmul %8, %10, %cst_11 {dimension_numbers = #tpu.dot_dimension_numbers<[1], [0], [0], [1], [0, 0, 1, 1], [], []>} : vector<8x128xbf16>, vector<128x384xbf16>, vector<8x384xf32> -> vector<8x384xf32>
    %c0_12 = arith.constant 0 : index
    %c0_13 = arith.constant 0 : index
    %c0_14 = arith.constant 0 : index
    %12 = vector.load %arg6[%c0_12, %c0_13, %c0_14] : memref<2x1x384xf32, #tpu.memory_space<vmem>>, vector<1x1x384xf32>
    %13 = vector.shape_cast %12 : vector<1x1x384xf32> to vector<1x384xf32>
    %14 = vector.broadcast %13 : vector<1x384xf32> to vector<8x384xf32>
    %15 = arith.addf %11, %14 : vector<8x384xf32>
    %16 = vector.extract_strided_slice %5 {offsets = [0, 0], sizes = [8, 384], strides = [1, 1]} : vector<8x768xf32> to vector<8x384xf32>
    %17 = vector.extract_strided_slice %16 {offsets = [0, 0], sizes = [8, 128], strides = [1, 1]} : vector<8x384xf32> to vector<8x128xf32>
    %18 = vector.extract_strided_slice %15 {offsets = [0, 0], sizes = [8, 128], strides = [1, 1]} : vector<8x384xf32> to vector<8x128xf32>
    %19 = arith.addf %17, %18 : vector<8x128xf32>
    %20 = arith.negf %19 : vector<8x128xf32>
    %21 = math.exp %20 : vector<8x128xf32>
    %cst_15 = arith.constant 1.000000e+00 : f32
    %22 = vector.broadcast %cst_15 : f32 to vector<8x128xf32>
    %23 = arith.addf %22, %21 : vector<8x128xf32>
    %24 = arith.divf %22, %23 : vector<8x128xf32>
    %25 = vector.extract_strided_slice %16 {offsets = [0, 128], sizes = [8, 128], strides = [1, 1]} : vector<8x384xf32> to vector<8x128xf32>
    %26 = vector.extract_strided_slice %15 {offsets = [0, 128], sizes = [8, 128], strides = [1, 1]} : vector<8x384xf32> to vector<8x128xf32>
    %27 = arith.addf %25, %26 : vector<8x128xf32>
    %28 = arith.negf %27 : vector<8x128xf32>
    %29 = math.exp %28 : vector<8x128xf32>
    %cst_16 = arith.constant 1.000000e+00 : f32
    %30 = vector.broadcast %cst_16 : f32 to vector<8x128xf32>
    %31 = arith.addf %30, %29 : vector<8x128xf32>
    %32 = arith.divf %30, %31 : vector<8x128xf32>
    %33 = vector.extract_strided_slice %16 {offsets = [0, 256], sizes = [8, 128], strides = [1, 1]} : vector<8x384xf32> to vector<8x128xf32>
    %34 = vector.extract_strided_slice %15 {offsets = [0, 256], sizes = [8, 128], strides = [1, 1]} : vector<8x384xf32> to vector<8x128xf32>
    %35 = arith.mulf %24, %34 : vector<8x128xf32>
    %36 = arith.addf %33, %35 : vector<8x128xf32>
    %37 = math.tanh %36 : vector<8x128xf32>
    %cst_17 = arith.constant 1.000000e+00 : f32
    %38 = vector.broadcast %cst_17 : f32 to vector<8x128xf32>
    %39 = arith.subf %38, %32 : vector<8x128xf32>
    %40 = arith.mulf %39, %37 : vector<8x128xf32>
    %41 = arith.mulf %32, %7 : vector<8x128xf32>
    %42 = arith.addf %40, %41 : vector<8x128xf32>
    %c1 = arith.constant 1 : index
    %c0_18 = arith.constant 0 : index
    %c0_19 = arith.constant 0 : index
    %43 = vector.load %arg1[%c1, %c0_18, %c0_19] : memref<2x8x128xf32, #tpu.memory_space<vmem>>, vector<1x8x128xf32>
    %44 = vector.shape_cast %43 : vector<1x8x128xf32> to vector<8x128xf32>
    %45 = arith.truncf %44 : vector<8x128xf32> to vector<8x128xbf16>
    %c1_20 = arith.constant 1 : index
    %c0_21 = arith.constant 0 : index
    %c0_22 = arith.constant 0 : index
    %46 = vector.load %arg4[%c1_20, %c0_21, %c0_22] : memref<2x128x384xbf16, #tpu.memory_space<vmem>>, vector<1x128x384xbf16>
    %47 = vector.shape_cast %46 : vector<1x128x384xbf16> to vector<128x384xbf16>
    %cst_23 = arith.constant dense<0.000000e+00> : vector<8x384xf32>
    %48 = tpu.matmul %45, %47, %cst_23 {dimension_numbers = #tpu.dot_dimension_numbers<[1], [0], [0], [1], [0, 0, 1, 1], [], []>} : vector<8x128xbf16>, vector<128x384xbf16>, vector<8x384xf32> -> vector<8x384xf32>
    %c1_24 = arith.constant 1 : index
    %c0_25 = arith.constant 0 : index
    %c0_26 = arith.constant 0 : index
    %49 = vector.load %arg6[%c1_24, %c0_25, %c0_26] : memref<2x1x384xf32, #tpu.memory_space<vmem>>, vector<1x1x384xf32>
    %50 = vector.shape_cast %49 : vector<1x1x384xf32> to vector<1x384xf32>
    %51 = vector.broadcast %50 : vector<1x384xf32> to vector<8x384xf32>
    %52 = arith.addf %48, %51 : vector<8x384xf32>
    %53 = vector.extract_strided_slice %5 {offsets = [0, 384], sizes = [8, 384], strides = [1, 1]} : vector<8x768xf32> to vector<8x384xf32>
    %54 = vector.extract_strided_slice %53 {offsets = [0, 0], sizes = [8, 128], strides = [1, 1]} : vector<8x384xf32> to vector<8x128xf32>
    %55 = vector.extract_strided_slice %52 {offsets = [0, 0], sizes = [8, 128], strides = [1, 1]} : vector<8x384xf32> to vector<8x128xf32>
    %56 = arith.addf %54, %55 : vector<8x128xf32>
    %57 = arith.negf %56 : vector<8x128xf32>
    %58 = math.exp %57 : vector<8x128xf32>
    %cst_27 = arith.constant 1.000000e+00 : f32
    %59 = vector.broadcast %cst_27 : f32 to vector<8x128xf32>
    %60 = arith.addf %59, %58 : vector<8x128xf32>
    %61 = arith.divf %59, %60 : vector<8x128xf32>
    %62 = vector.extract_strided_slice %53 {offsets = [0, 128], sizes = [8, 128], strides = [1, 1]} : vector<8x384xf32> to vector<8x128xf32>
    %63 = vector.extract_strided_slice %52 {offsets = [0, 128], sizes = [8, 128], strides = [1, 1]} : vector<8x384xf32> to vector<8x128xf32>
    %64 = arith.addf %62, %63 : vector<8x128xf32>
    %65 = arith.negf %64 : vector<8x128xf32>
    %66 = math.exp %65 : vector<8x128xf32>
    %cst_28 = arith.constant 1.000000e+00 : f32
    %67 = vector.broadcast %cst_28 : f32 to vector<8x128xf32>
    %68 = arith.addf %67, %66 : vector<8x128xf32>
    %69 = arith.divf %67, %68 : vector<8x128xf32>
    %70 = vector.extract_strided_slice %53 {offsets = [0, 256], sizes = [8, 128], strides = [1, 1]} : vector<8x384xf32> to vector<8x128xf32>
    %71 = vector.extract_strided_slice %52 {offsets = [0, 256], sizes = [8, 128], strides = [1, 1]} : vector<8x384xf32> to vector<8x128xf32>
    %72 = arith.mulf %61, %71 : vector<8x128xf32>
    %73 = arith.addf %70, %72 : vector<8x128xf32>
    %74 = math.tanh %73 : vector<8x128xf32>
    %cst_29 = arith.constant 1.000000e+00 : f32
    %75 = vector.broadcast %cst_29 : f32 to vector<8x128xf32>
    %76 = arith.subf %75, %69 : vector<8x128xf32>
    %77 = arith.mulf %76, %74 : vector<8x128xf32>
    %78 = arith.mulf %69, %44 : vector<8x128xf32>
    %79 = arith.addf %77, %78 : vector<8x128xf32>
    %c0_30 = arith.constant 0 : index
    %c0_31 = arith.constant 0 : index
    %c0_32 = arith.constant 0 : index
    %80 = vector.load %arg10[%c0_30, %c0_31, %c0_32] : memref<2x8x128xf32, #tpu.memory_space<vmem>>, vector<1x8x128xf32>
    %81 = vector.shape_cast %80 : vector<1x8x128xf32> to vector<8x128xf32>
    %82 = vector.shape_cast %42 : vector<8x128xf32> to vector<1x8x128xf32>
    tpu.vector_store %arg10[%c0_30, %c0_31, %c0_32], %82 {strides = array<i32>} : memref<2x8x128xf32, #tpu.memory_space<vmem>>, vector<1x8x128xf32>,
    %c1_33 = arith.constant 1 : index
    %c0_34 = arith.constant 0 : index
    %c0_35 = arith.constant 0 : index
    %83 = vector.load %arg10[%c1_33, %c0_34, %c0_35] : memref<2x8x128xf32, #tpu.memory_space<vmem>>, vector<1x8x128xf32>
    %84 = vector.shape_cast %83 : vector<1x8x128xf32> to vector<8x128xf32>
    %85 = vector.shape_cast %79 : vector<8x128xf32> to vector<1x8x128xf32>
    tpu.vector_store %arg10[%c1_33, %c0_34, %c0_35], %85 {strides = array<i32>} : memref<2x8x128xf32, #tpu.memory_space<vmem>>, vector<1x8x128xf32>,
    %86 = arith.addf %42, %79 : vector<8x128xf32>
    %c0_36 = arith.constant 0 : index
    %c0_37 = arith.constant 0 : index
    %c0_38 = arith.constant 0 : index
    %87 = vector.load %arg2[%c0_36, %c0_37, %c0_38] : memref<8x8x128xbf16, #tpu.memory_space<vmem>>, vector<8x8x128xbf16>
    %88 = vector.shape_cast %86 : vector<8x128xf32> to vector<8x1x128xf32>
    %89 = arith.truncf %88 : vector<8x1x128xf32> to vector<8x1x128xbf16>
    "tpu.trace_start"() <{level = 10 : i32, message = "bqh,bsh->bqs"}> : () -> ()
    %cst_39 = arith.constant dense<0.000000e+00> : vector<8x1x8xf32>
    %90 = tpu.matmul %89, %87, %cst_39 {dimension_numbers = #tpu.dot_dimension_numbers<[2], [2], [1], [1], [0, 0, 0, 1, 1, 1], [0], [0]>} : vector<8x1x128xbf16>, vector<8x8x128xbf16>, vector<8x1x8xf32> -> vector<8x1x8xf32>
    "tpu.trace_stop"() : () -> ()
    %cst_40 = arith.constant dense<0xFF800000> : vector<8x1xf32>
    %91 = vector.multi_reduction <maximumf>, %90, %cst_40 [2] : vector<8x1x8xf32> to vector<8x1xf32>
    %92 = vector.shape_cast %91 : vector<8x1xf32> to vector<8x1x1xf32>
    %93 = vector.broadcast %92 : vector<8x1x1xf32> to vector<8x1x8xf32>
    %94 = arith.subf %90, %93 : vector<8x1x8xf32>
    %95 = math.exp %94 : vector<8x1x8xf32>
    %cst_41 = arith.constant dense<0.000000e+00> : vector<8x1xf32>
    %96 = vector.multi_reduction <add>, %95, %cst_41 [2] : vector<8x1x8xf32> to vector<8x1xf32>
    %97 = vector.shape_cast %96 : vector<8x1xf32> to vector<8x1x1xf32>
    %98 = tpu.reciprocal %97 {approx = true} : vector<8x1x1xf32> -> vector<8x1x1xf32>
    %99 = vector.broadcast %98 : vector<8x1x1xf32> to vector<8x1x8xf32>
    %100 = arith.mulf %95, %99 : vector<8x1x8xf32>
    %101 = arith.truncf %100 : vector<8x1x8xf32> to vector<8x1x8xbf16>
    "tpu.trace_start"() <{level = 10 : i32, message = "bqs,bsh->bqh"}> : () -> ()
    %cst_42 = arith.constant dense<0.000000e+00> : vector<8x1x128xf32>
    %102 = tpu.matmul %101, %87, %cst_42 {dimension_numbers = #tpu.dot_dimension_numbers<[2], [1], [1], [2], [0, 0, 0, 1, 1, 2], [0], [0]>} : vector<8x1x8xbf16>, vector<8x8x128xbf16>, vector<8x1x128xf32> -> vector<8x1x128xf32>
    "tpu.trace_stop"() : () -> ()
    %103 = vector.shape_cast %102 : vector<8x1x128xf32> to vector<8x128xf32>
    %104 = arith.truncf %86 : vector<8x128xf32> to vector<8x128xbf16>
    %c0_43 = arith.constant 0 : index
    %c0_44 = arith.constant 0 : index
    %c0_45 = arith.constant 0 : index
    %105 = vector.load %arg7[%c0_43, %c0_44, %c0_45] : memref<2x128x128xbf16, #tpu.memory_space<vmem>>, vector<1x128x128xbf16>
    %106 = vector.shape_cast %105 : vector<1x128x128xbf16> to vector<128x128xbf16>
    %cst_46 = arith.constant dense<0.000000e+00> : vector<8x128xf32>
    %107 = tpu.matmul %104, %106, %cst_46 {dimension_numbers = #tpu.dot_dimension_numbers<[1], [0], [0], [1], [0, 0, 1, 1], [], []>} : vector<8x128xbf16>, vector<128x128xbf16>, vector<8x128xf32> -> vector<8x128xf32>
    %108 = arith.truncf %103 : vector<8x128xf32> to vector<8x128xbf16>
    %c1_47 = arith.constant 1 : index
    %c0_48 = arith.constant 0 : index
    %c0_49 = arith.constant 0 : index
    %109 = vector.load %arg7[%c1_47, %c0_48, %c0_49] : memref<2x128x128xbf16, #tpu.memory_space<vmem>>, vector<1x128x128xbf16>
    %110 = vector.shape_cast %109 : vector<1x128x128xbf16> to vector<128x128xbf16>
    %cst_50 = arith.constant dense<0.000000e+00> : vector<8x128xf32>
    %111 = tpu.matmul %108, %110, %cst_50 {dimension_numbers = #tpu.dot_dimension_numbers<[1], [0], [0], [1], [0, 0, 1, 1], [], []>} : vector<8x128xbf16>, vector<128x128xbf16>, vector<8x128xf32> -> vector<8x128xf32>
    %112 = arith.addf %107, %111 : vector<8x128xf32>
    %c0_51 = arith.constant 0 : index
    %c0_52 = arith.constant 0 : index
    %113 = vector.load %arg8[%c0_51, %c0_52] : memref<1x128xf32, #tpu.memory_space<vmem>>, vector<1x128xf32>
    %114 = vector.broadcast %113 : vector<1x128xf32> to vector<8x128xf32>
    %115 = arith.addf %112, %114 : vector<8x128xf32>
    %116 = math.tanh %115 : vector<8x128xf32>
    %117 = arith.truncf %116 : vector<8x128xf32> to vector<8x128xbf16>
    %c0_53 = arith.constant 0 : index
    %c0_54 = arith.constant 0 : index
    %118 = vector.load %arg9[%c0_53, %c0_54] : memref<8x128xbf16, #tpu.memory_space<vmem>>, vector<8x128xbf16>
    tpu.vector_store %arg9[%c0_53, %c0_54], %117 {strides = array<i32>} : memref<8x128xbf16, #tpu.memory_space<vmem>>, vector<8x128xbf16>,
    return
  }
}

</mosaic_0001>

<llo_original>
// kernel: luong_attn_decoder_step.3
$region0: #{luong_attn_decoder_step.3}
  #allocation0 [shape = 'u32[]', space=smem, size = 0x4, offset = 0x4, fixed_abs, tag = 'smem constant byte address 0x4 - core index']
  #allocation1 [shape = 'u32[144,128]{1,0:T(1,128)}', space=vmem, size = 0x12000, scoped, tag = 'internal scratch']
  %s0 = inlined_call_operand.vmem [shape: bf16[8,128], index: 0, kind: input, shape index: {}]
  %s1 = inlined_call_operand.vmem [shape: bf16[128,128], index: 1, kind: input, shape index: {}]
  %s2 = inlined_call_operand.vmem [shape: f32[1,128], index: 2, kind: input, shape index: {}]
  %s3 = inlined_call_operand.vmem [shape: f32[8,128], index: 3, kind: output, shape index: {}]
  %s4 = sld [smem:[#allocation0]]
  $region22: #{luong_attn_decoder_step.3} parent=0
    _
  %s6 = ssub.s32 1, %s4
  %s7 = scalar_select 0, %s6, %s4
  // Predicated region
  $region2: #{luong_attn_decoder_step.3} parent=0 // pred_check
    _
  $region3: #{luong_attn_decoder_step.3} parent=0 // pred_check_branch
    %9 = sbr.rel (0) target = $region5
  $region4: #{luong_attn_decoder_step.3} parent=0 // pred_region
    _
  $region5: #{luong_attn_decoder_step.3} parent=0 // pred_fallthru
    _
  // Predicated region
  $region6: #{luong_attn_decoder_step.3} parent=0 // pred_check
    _
  $region7: #{luong_attn_decoder_step.3} parent=0 // pred_check_branch
    %11 = sbr.rel (0) target = $region9
  $region8: #{luong_attn_decoder_step.3} parent=0 // pred_region
    _
  $region9: #{luong_attn_decoder_step.3} parent=0 // pred_fallthru
    _
  // Predicated region
  $region10: #{luong_attn_decoder_step.3} parent=0 // pred_check
    _
  $region11: #{luong_attn_decoder_step.3} parent=0 // pred_check_branch
    %13 = sbr.rel (0) target = $region13
  $region12: #{luong_attn_decoder_step.3} parent=0 // pred_region
    _
  $region13: #{luong_attn_decoder_step.3} parent=0 // pred_fallthru
    _
  %v15 = vld [vmem:[%s0] sm:$0xf]
  %v16 = vld [vmem:[%s1] sm:$0xf]
  %v17 = vld [vmem:[%s1 + $0x4] sm:$0xf]
  %v18 = vld [vmem:[%s1 + $0x8] sm:$0xf]
  %v19 = vld [vmem:[%s1 + $0xc] sm:$0xf]
  %v20 = vld [vmem:[%s1 + $0x10] sm:$0xf]
  %v21 = vld [vmem:[%s1 + $0x14] sm:$0xf]
  %v22 = vld [vmem:[%s1 + $0x18] sm:$0xf]
  %v23 = vld [vmem:[%s1 + $0x1c] sm:$0xf]
  %v24 = vld [vmem:[%s1 + $0x20] sm:$0xf]
  %v25 = vld [vmem:[%s1 + $0x24] sm:$0xf]
  %v26 = vld [vmem:[%s1 + $0x28] sm:$0xf]
  %v27 = vld [vmem:[%s1 + $0x2c] sm:$0xf]
  %v28 = vld [vmem:[%s1 + $0x30] sm:$0xf]
  %v29 = vld [vmem:[%s1 + $0x34] sm:$0xf]
  %v30 = vld [vmem:[%s1 + $0x38] sm:$0xf]
  %v31 = vld [vmem:[%s1 + $0x3c] sm:$0xf]
  %v32 = vld [vmem:[%s2] sm:$0x1]
  %v34 = vlaneseq
  %v35 = vshrl.u32 %v34, 7
  %v36 = vsub.s32 0, %v35
  %v37 = vrot.slane %v32, %v36
  %v55 = vunpack.c.l.b16 %v16
  %v56 = vunpack.c.l.b16 %v17
  %v57 = vunpack.c.l.b16 %v18
  %v58 = vunpack.c.l.b16 %v19
  %v59 = vunpack.c.l.b16 %v20
  %v60 = vunpack.c.l.b16 %v21
  %v61 = vunpack.c.l.b16 %v22
  %v62 = vunpack.c.l.b16 %v23
  %v63 = vunpack.c.l.b16 %v24
  %v64 = vunpack.c.l.b16 %v25
  %v65 = vunpack.c.l.b16 %v26
  %v66 = vunpack.c.l.b16 %v27
  %v67 = vunpack.c.l.b16 %v28
  %v68 = vunpack.c.l.b16 %v29
  %v69 = vunpack.c.l.b16 %v30
  %v70 = vunpack.c.l.b16 %v31
  %v71 = vpack.c.b16 %v56, %v55
  %v72 = vpack.c.b16 %v58, %v57
  %v73 = vpack.c.b16 %v60, %v59
  %v74 = vpack.c.b16 %v62, %v61
  %v75 = vpack.c.b16 %v64, %v63
  %v76 = vpack.c.b16 %v66, %v65
  %v77 = vpack.c.b16 %v68, %v67
  %v78 = vpack.c.b16 %v70, %v69
  %87 = vmatprep.subr.bf16.mxu0 0
  %88 = vmatpush1.bf16.msra.mxu0 %v78
  %89 = vmatprep.subr.bf16.mxu0 0
  %90 = vmatpush1.bf16.msra.mxu0 %v77
  %91 = vmatprep.subr.bf16.mxu0 0
  %92 = vmatpush1.bf16.msra.mxu0 %v76
  %93 = vmatprep.subr.bf16.mxu0 0
  %94 = vmatpush1.bf16.msra.mxu0 %v75
  %95 = vmatprep.subr.bf16.mxu0 0
  %96 = vmatpush1.bf16.msra.mxu0 %v74
  %97 = vmatprep.subr.bf16.mxu0 0
  %98 = vmatpush1.bf16.msra.mxu0 %v73
  %99 = vmatprep.subr.bf16.mxu0 0
  %100 = vmatpush1.bf16.msra.mxu0 %v72
  %101 = vmatprep.subr.bf16.mxu0 0
  %102 = vmatpush1.bf16.msra.mxu0 %v71
  %103 = vmatprep.subr.bf16.mxu0 0
  %104 = vmatpush2.bf16.msra.mxu0 0
  %105 = vmatprep.subr.bf16.mxu0 0
  %106 = vmatpush2.bf16.msra.mxu0 0
  %107 = vmatprep.subr.bf16.mxu0 0
  %108 = vmatpush2.bf16.msra.mxu0 0
  %109 = vmatprep.subr.bf16.mxu0 0
  %110 = vmatpush2.bf16.msra.mxu0 0
  %111 = vmatprep.subr.bf16.mxu0 0
  %112 = vmatpush2.bf16.msra.mxu0 0
  %113 = vmatprep.subr.bf16.mxu0 0
  %114 = vmatpush2.bf16.msra.mxu0 0
  %115 = vmatprep.subr.bf16.mxu0 0
  %116 = vmatpush2.bf16.msra.mxu0 0
  %117 = vmatprep.subr.bf16.mxu0 0
  %118 = vmatpush2.bf16.msra.mxu0 0
  %119 = vmatprep.mubr.bf16.mxu0 0
  %120 = vmatmul.mubr.bf16.gmra.mxu0 %v15
  %v121 = vpop.f32.mrf.mxu0
  %v122 = vadd.f32 %v37, %v121
  %v123 = vpop.f32.mrf.mxu0
  %v124 = vpop.f32.mrf.mxu0
  %v125 = vpop.f32.mrf.mxu0
  %126 = vdwg.mxu0
  %127 = vst [vmem:[%s3] sm:$0xff] %v122
  // Predicated region
  $region14: #{luong_attn_decoder_step.3} parent=0 // pred_check
    _
  $region15: #{luong_attn_decoder_step.3} parent=0 // pred_check_branch
    %129 = sbr.rel (0) target = $region17
  $region16: #{luong_attn_decoder_step.3} parent=0 // pred_region
    _
  $region17: #{luong_attn_decoder_step.3} parent=0 // pred_fallthru
    _
  // Predicated region
  $region18: #{luong_attn_decoder_step.3} parent=0 // pred_check
    _
  $region19: #{luong_attn_decoder_step.3} parent=0 // pred_check_branch
    %131 = sbr.rel (0) target = $region21
  $region20: #{luong_attn_decoder_step.3} parent=0 // pred_region
    _
  $region21: #{luong_attn_decoder_step.3} parent=0 // pred_fallthru
    _

// kernel: luong_attn_decoder_step.2
$region0: #{luong_attn_decoder_step.2}
  #allocation0 [shape = 'u32[]', space=smem, size = 0x4, offset = 0x4, fixed_abs, tag = 'smem constant byte address 0x4 - core index']
  #allocation1 [shape = 'u32[144,128]{1,0:T(1,128)}', space=vmem, size = 0x12000, scoped, tag = 'internal scratch']
  %s0 = inlined_call_operand.vmem [shape: bf16[8,128], index: 0, kind: input, shape index: {}]
  %s1 = inlined_call_operand.vmem [shape: f32[2,8,128], index: 1, kind: input, shape index: {}, may-alias: {1,10}]
  %s2 = inlined_call_operand.vmem [shape: bf16[8,8,128], index: 2, kind: input, shape index: {}]
  %s3 = inlined_call_operand.hbm [shape: bf16[128,768], index: 3, kind: input, shape index: {}]
  %s4 = inlined_call_operand.hbm [shape: bf16[2,128,384], index: 4, kind: input, shape index: {}]
  %s5 = inlined_call_operand.vmem [shape: f32[1,768], index: 5, kind: input, shape index: {}]
  %s6 = inlined_call_operand.vmem [shape: f32[2,1,384], index: 6, kind: input, shape index: {}]
  %s7 = inlined_call_operand.hbm [shape: bf16[2,128,128], index: 7, kind: input, shape index: {}]
  %s8 = inlined_call_operand.vmem [shape: f32[1,128], index: 8, kind: input, shape index: {}]
  %s9 = inlined_call_operand.vmem [shape: bf16[8,128], index: 9, kind: output, shape index: {0}]
  %s10 = inlined_call_operand.vmem [shape: f32[2,8,128], index: 10, kind: output, shape index: {1}, may-alias: {1,10}]
  %11 = xla_tuple %s9, %s10
  %s12 = sld [smem:[#allocation0]]
  $region66: #{luong_attn_decoder_step.2} parent=0
    _
  %s14 = ssub.s32 1, %s12
  %s15 = scalar_select 0, %s14, %s12
  $region1: #{luong_attn_decoder_step.2} parent=0
    #allocation2 [shape = 'u8[196608]{0}', space=vmem, size = 0x30000, scoped, tag = 'input window, operand 3, single buffered']
    #allocation3 [shape = 's32[1]{0}', space=sflag, size = 0x4, scoped, tag = 'scoped memory for luong_attn_decoder_step.2']
    #allocation4 [shape = 'u8[196608]{0}', space=vmem, size = 0x30000, scoped, tag = 'input window, operand 4, single buffered']
    #allocation5 [shape = 's32[1]{0}', space=sflag, size = 0x4, scoped, tag = 'scoped memory for luong_attn_decoder_step.2']
    #allocation6 [shape = 'u8[65536]{0}', space=vmem, size = 0x10000, scoped, tag = 'input window, operand 7, single buffered']
    %16 = vsyncpa [#allocation3], 0
    %17 = vsyncpa [#allocation5], 0
    // Predicated region
    $region2: #{luong_attn_decoder_step.2} parent=1 // pred_check
      _
    $region3: #{luong_attn_decoder_step.2} parent=1 // pred_check_branch
      %19 = sbr.rel (0) target = $region5
    $region4: #{luong_attn_decoder_step.2} parent=1 // pred_region
      _
    $region5: #{luong_attn_decoder_step.2} parent=1 // pred_fallthru
      _
    // Predicated region
    $region6: #{luong_attn_decoder_step.2} parent=1 // pred_check
      _
    $region7: #{luong_attn_decoder_step.2} parent=1 // pred_check_branch
      %21 = sbr.rel (0) target = $region9
    $region8: #{luong_attn_decoder_step.2} parent=1 // pred_region
      _
    $region9: #{luong_attn_decoder_step.2} parent=1 // pred_fallthru
      _
    // Predicated region
    $region10: #{luong_attn_decoder_step.2} parent=1 // pred_check
      _
    $region11: #{luong_attn_decoder_step.2} parent=1 // pred_check_branch
      %23 = sbr.rel (0) target = $region13
    $region12: #{luong_attn_decoder_step.2} parent=1 // pred_region
      _
    $region13: #{luong_attn_decoder_step.2} parent=1 // pred_fallthru
      _
    // Predicated region
    $region14: #{luong_attn_decoder_step.2} parent=1 // pred_check
      _
    $region15: #{luong_attn_decoder_step.2} parent=1 // pred_check_branch
      %25 = sbr.rel (0) target = $region17
    $region16: #{luong_attn_decoder_step.2} parent=1 // pred_region
      %s27 = ssub.s32 6144, 6144
      %28 = vsyncadd [#allocation3], %s27
      %s29 = sshll.u32 [#allocation2], 4
      %s30 = int_to_ptr.vmem [resolvable:$true] %s29
      %35 = dma.hbm_to_vmem [thread:$0]  %s3, 6144, %s30, [#allocation3], 384, 384, 24
    $region17: #{luong_attn_decoder_step.2} parent=1 // pred_fallthru
      _
    // Predicated region
    $region18: #{luong_attn_decoder_step.2} parent=1 // pred_check
      _
    $region19: #{luong_attn_decoder_step.2} parent=1 // pred_check_branch
      %37 = sbr.rel (0) target = $region21
    $region20: #{luong_attn_decoder_step.2} parent=1 // pred_region
      %s39 = ssub.s32 6144, 6144
      %40 = vsyncadd [#allocation5], %s39
      %s41 = sshll.u32 [#allocation4], 4
      %s42 = int_to_ptr.vmem [resolvable:$true] %s41
      %47 = dma.hbm_to_vmem [thread:$0]  %s4, 6144, %s42, [#allocation5], 192, 192, 12
    $region21: #{luong_attn_decoder_step.2} parent=1 // pred_fallthru
      _
    // Predicated region
    $region22: #{luong_attn_decoder_step.2} parent=1 // pred_check
      _
    $region23: #{luong_attn_decoder_step.2} parent=1 // pred_check_branch
      %49 = sbr.rel (0) target = $region25
    $region24: #{luong_attn_decoder_step.2} parent=1 // pred_region
      _
    $region25: #{luong_attn_decoder_step.2} parent=1 // pred_fallthru
      _
    // Predicated region
    $region26: #{luong_attn_decoder_step.2} parent=1 // pred_check
      _
    $region27: #{luong_attn_decoder_step.2} parent=1 // pred_check_branch
      %51 = sbr.rel (0) target = $region29
    $region28: #{luong_attn_decoder_step.2} parent=1 // pred_region
      _
    $region29: #{luong_attn_decoder_step.2} parent=1 // pred_fallthru
      _
    // Predicated region
    $region30: #{luong_attn_decoder_step.2} parent=1 // pred_check
      _
    $region31: #{luong_attn_decoder_step.2} parent=1 // pred_check_branch
      %53 = sbr.rel (0) target = $region33
    $region32: #{luong_attn_decoder_step.2} parent=1 // pred_region
      %s55 = ssub.s32 2048, 2048
      %56 = vsyncadd [#allocation5], %s55
      %s57 = sshll.u32 [#allocation6], 4
      %s58 = int_to_ptr.vmem [resolvable:$true] %s57
      %63 = dma.hbm_to_vmem [thread:$0]  %s7, 2048, %s58, [#allocation5], 64, 64, 4
    $region33: #{luong_attn_decoder_step.2} parent=1 // pred_fallthru
      _
    // Predicated region
    $region34: #{luong_attn_decoder_step.2} parent=1 // pred_check
      _
    $region35: #{luong_attn_decoder_step.2} parent=1 // pred_check_branch
      %65 = sbr.rel (0) target = $region37
    $region36: #{luong_attn_decoder_step.2} parent=1 // pred_region
      _
    $region37: #{luong_attn_decoder_step.2} parent=1 // pred_fallthru
      _
    // Predicated region
    $region38: #{luong_attn_decoder_step.2} parent=1 // pred_check
      _
    $region39: #{luong_attn_decoder_step.2} parent=1 // pred_check_branch
      %67 = sbr.rel (0) target = $region41
    $region40: #{luong_attn_decoder_step.2} parent=1 // pred_region
      %68 = dma.done [#allocation3], 6144
    $region41: #{luong_attn_decoder_step.2} parent=1 // pred_fallthru
      _
    // Predicated region
    $region42: #{luong_attn_decoder_step.2} parent=1 // pred_check
      _
    $region43: #{luong_attn_decoder_step.2} parent=1 // pred_check_branch
      %70 = sbr.rel (0) target = $region45
    $region44: #{luong_attn_decoder_step.2} parent=1 // pred_region
      %71 = dma.done [#allocation5], 6144
    $region45: #{luong_attn_decoder_step.2} parent=1 // pred_fallthru
      _
    // Predicated region
    $region46: #{luong_attn_decoder_step.2} parent=1 // pred_check
      _
    $region47: #{luong_attn_decoder_step.2} parent=1 // pred_check_branch
      %73 = sbr.rel (0) target = $region49
    $region48: #{luong_attn_decoder_step.2} parent=1 // pred_region
      %74 = dma.done [#allocation5], 2048
    $region49: #{luong_attn_decoder_step.2} parent=1 // pred_fallthru
      _
    %v76 = vld [vmem:[%s0] sm:$0xf]
    %v77 = vld [vmem:[#allocation2] sm:$0xff]
    %v78 = vld [vmem:[#allocation2 + $0x8] sm:$0xff]
    %v79 = vld [vmem:[#allocation2 + $0x10] sm:$0xff]
    %v80 = vld [vmem:[#allocation2 + $0x18] sm:$0xff]
    %v81 = vld [vmem:[#allocation2 + $0x20] sm:$0xff]
    %v82 = vld [vmem:[#allocation2 + $0x28] sm:$0xff]
    %v83 = vld [vmem:[#allocation2 + $0x30] sm:$0xff]
    %v84 = vld [vmem:[#allocation2 + $0x38] sm:$0xff]
    %v85 = vld [vmem:[#allocation2 + $0x40] sm:$0xff]
    %v86 = vld [vmem:[#allocation2 + $0x48] sm:$0xff]
    %v87 = vld [vmem:[#allocation2 + $0x50] sm:$0xff]
    %v88 = vld [vmem:[#allocation2 + $0x58] sm:$0xff]
    %v89 = vld [vmem:[#allocation2 + $0x60] sm:$0xff]
    %v90 = vld [vmem:[#allocation2 + $0x68] sm:$0xff]
    %v91 = vld [vmem:[#allocation2 + $0x70] sm:$0xff]
    %v92 = vld [vmem:[#allocation2 + $0x78] sm:$0xff]
    %v93 = vld [vmem:[#allocation2 + $0x80] sm:$0xff]
    %v94 = vld [vmem:[#allocation2 + $0x88] sm:$0xff]
    %v95 = vld [vmem:[#allocation2 + $0x90] sm:$0xff]
    %v96 = vld [vmem:[#allocation2 + $0x98] sm:$0xff]
    %v97 = vld [vmem:[#allocation2 + $0xa0] sm:$0xff]
    %v98 = vld [vmem:[#allocation2 + $0xa8] sm:$0xff]
    %v99 = vld [vmem:[#allocation2 + $0xb0] sm:$0xff]
    %v100 = vld [vmem:[#allocation2 + $0xb8] sm:$0xff]
    %v101 = vld [vmem:[#allocation2 + $0xc0] sm:$0xff]
    %v102 = vld [vmem:[#allocation2 + $0xc8] sm:$0xff]
    %v103 = vld [vmem:[#allocation2 + $0xd0] sm:$0xff]
    %v104 = vld [vmem:[#allocation2 + $0xd8] sm:$0xff]
    %v105 = vld [vmem:[#allocation2 + $0xe0] sm:$0xff]
    %v106 = vld [vmem:[#allocation2 + $0xe8] sm:$0xff]
    %v107 = vld [vmem:[#allocation2 + $0xf0] sm:$0xff]
    %v108 = vld [vmem:[#allocation2 + $0xf8] sm:$0xff]
    %v109 = vld [vmem:[#allocation2 + $0x100] sm:$0xff]
    %v110 = vld [vmem:[#allocation2 + $0x108] sm:$0xff]
    %v111 = vld [vmem:[#allocation2 + $0x110] sm:$0xff]
    %v112 = vld [vmem:[#allocation2 + $0x118] sm:$0xff]
    %v113 = vld [vmem:[#allocation2 + $0x120] sm:$0xff]
    %v114 = vld [vmem:[#allocation2 + $0x128] sm:$0xff]
    %v115 = vld [vmem:[#allocation2 + $0x130] sm:$0xff]
    %v116 = vld [vmem:[#allocation2 + $0x138] sm:$0xff]
    %v117 = vld [vmem:[#allocation2 + $0x140] sm:$0xff]
    %v118 = vld [vmem:[#allocation2 + $0x148] sm:$0xff]
    %v119 = vld [vmem:[#allocation2 + $0x150] sm:$0xff]
    %v120 = vld [vmem:[#allocation2 + $0x158] sm:$0xff]
    %v121 = vld [vmem:[#allocation2 + $0x160] sm:$0xff]
    %v122 = vld [vmem:[#allocation2 + $0x168] sm:$0xff]
    %v123 = vld [vmem:[#allocation2 + $0x170] sm:$0xff]
    %v124 = vld [vmem:[#allocation2 + $0x178] sm:$0xff]
    %v125 = vld [vmem:[%s5] sm:$0x3f]
    %v127 = vlaneseq
    %v128 = vshrl.u32 %v127, 7
    %v129 = vsub.s32 0, %v128
    %v130 = vrot.slane %v125, %v129
    %v131 = vlaneseq
    %v132 = vshrl.u32 %v131, 7
    %v133 = vsub.s32 1, %v132
    %v134 = vrot.slane %v125, %v133
    %v135 = vlaneseq
    %v136 = vshrl.u32 %v135, 7
    %v137 = vsub.s32 2, %v136
    %v138 = vrot.slane %v125, %v137
    %v139 = vlaneseq
    %v140 = vshrl.u32 %v139, 7
    %v141 = vsub.s32 3, %v140
    %v142 = vrot.slane %v125, %v141
    %v143 = vlaneseq
    %v144 = vshrl.u32 %v143, 7
    %v145 = vsub.s32 4, %v144
    %v146 = vrot.slane %v125, %v145
    %v147 = vlaneseq
    %v148 = vshrl.u32 %v147, 7
    %v149 = vsub.s32 5, %v148
    %v150 = vrot.slane %v125, %v149
    %v205 = vunpack.c.l.b16 %v77
    %v206 = vunpack.c.h.b16 %v77
    %v207 = vunpack.c.l.b16 %v78
    %v208 = vunpack.c.h.b16 %v78
    %v209 = vunpack.c.l.b16 %v79
    %v210 = vunpack.c.h.b16 %v79
    %v211 = vunpack.c.l.b16 %v80
    %v212 = vunpack.c.h.b16 %v80
    %v213 = vunpack.c.l.b16 %v81
    %v214 = vunpack.c.h.b16 %v81
    %v215 = vunpack.c.l.b16 %v82
    %v216 = vunpack.c.h.b16 %v82
    %v217 = vunpack.c.l.b16 %v83
    %v218 = vunpack.c.h.b16 %v83
    %v219 = vunpack.c.l.b16 %v84
    %v220 = vunpack.c.h.b16 %v84
    %v221 = vunpack.c.l.b16 %v85
    %v222 = vunpack.c.h.b16 %v85
    %v223 = vunpack.c.l.b16 %v86
    %v224 = vunpack.c.h.b16 %v86
    %v225 = vunpack.c.l.b16 %v87
    %v226 = vunpack.c.h.b16 %v87
    %v227 = vunpack.c.l.b16 %v88
    %v228 = vunpack.c.h.b16 %v88
    %v229 = vunpack.c.l.b16 %v89
    %v230 = vunpack.c.h.b16 %v89
    %v231 = vunpack.c.l.b16 %v90
    %v232 = vunpack.c.h.b16 %v90
    %v233 = vunpack.c.l.b16 %v91
    %v234 = vunpack.c.h.b16 %v91
    %v235 = vunpack.c.l.b16 %v92
    %v236 = vunpack.c.h.b16 %v92
    %v237 = vunpack.c.l.b16 %v93
    %v238 = vunpack.c.h.b16 %v93
    %v239 = vunpack.c.l.b16 %v94
    %v240 = vunpack.c.h.b16 %v94
    %v241 = vunpack.c.l.b16 %v95
    %v242 = vunpack.c.h.b16 %v95
    %v243 = vunpack.c.l.b16 %v96
    %v244 = vunpack.c.h.b16 %v96
    %v245 = vunpack.c.l.b16 %v97
    %v246 = vunpack.c.h.b16 %v97
    %v247 = vunpack.c.l.b16 %v98
    %v248 = vunpack.c.h.b16 %v98
    %v249 = vunpack.c.l.b16 %v99
    %v250 = vunpack.c.h.b16 %v99
    %v251 = vunpack.c.l.b16 %v100
    %v252 = vunpack.c.h.b16 %v100
    %v253 = vunpack.c.l.b16 %v101
    %v254 = vunpack.c.h.b16 %v101
    %v255 = vunpack.c.l.b16 %v102
    %v256 = vunpack.c.h.b16 %v102
    %v257 = vunpack.c.l.b16 %v103
    %v258 = vunpack.c.h.b16 %v103
    %v259 = vunpack.c.l.b16 %v104
    %v260 = vunpack.c.h.b16 %v104
    %v261 = vunpack.c.l.b16 %v105
    %v262 = vunpack.c.h.b16 %v105
    %v263 = vunpack.c.l.b16 %v106
    %v264 = vunpack.c.h.b16 %v106
    %v265 = vunpack.c.l.b16 %v107
    %v266 = vunpack.c.h.b16 %v107
    %v267 = vunpack.c.l.b16 %v108
    %v268 = vunpack.c.h.b16 %v108
    %v269 = vunpack.c.l.b16 %v109
    %v270 = vunpack.c.h.b16 %v109
    %v271 = vunpack.c.l.b16 %v110
    %v272 = vunpack.c.h.b16 %v110
    %v273 = vunpack.c.l.b16 %v111
    %v274 = vunpack.c.h.b16 %v111
    %v275 = vunpack.c.l.b16 %v112
    %v276 = vunpack.c.h.b16 %v112
    %v277 = vunpack.c.l.b16 %v113
    %v278 = vunpack.c.h.b16 %v113
    %v279 = vunpack.c.l.b16 %v114
    %v280 = vunpack.c.h.b16 %v114
    %v281 = vunpack.c.l.b16 %v115
    %v282 = vunpack.c.h.b16 %v115
    %v283 = vunpack.c.l.b16 %v116
    %v284 = vunpack.c.h.b16 %v116
    %v285 = vunpack.c.l.b16 %v117
    %v286 = vunpack.c.h.b16 %v117
    %v287 = vunpack.c.l.b16 %v118
    %v288 = vunpack.c.h.b16 %v118
    %v289 = vunpack.c.l.b16 %v119
    %v290 = vunpack.c.h.b16 %v119
    %v291 = vunpack.c.l.b16 %v120
    %v292 = vunpack.c.h.b16 %v120
    %v293 = vunpack.c.l.b16 %v121
    %v294 = vunpack.c.h.b16 %v121
    %v295 = vunpack.c.l.b16 %v122
    %v296 = vunpack.c.h.b16 %v122
    %v297 = vunpack.c.l.b16 %v123
    %v298 = vunpack.c.h.b16 %v123
    %v299 = vunpack.c.l.b16 %v124
    %v300 = vunpack.c.h.b16 %v124
    %v301 = vpack.c.b16 %v211, %v205
    %v302 = vpack.c.b16 %v212, %v206
    %v303 = vpack.c.b16 %v213, %v207
    %v304 = vpack.c.b16 %v214, %v208
    %v305 = vpack.c.b16 %v215, %v209
    %v306 = vpack.c.b16 %v216, %v210
    %v307 = vpack.c.b16 %v223, %v217
    %v308 = vpack.c.b16 %v224, %v218
    %v309 = vpack.c.b16 %v225, %v219
    %v310 = vpack.c.b16 %v226, %v220
    %v311 = vpack.c.b16 %v227, %v221
    %v312 = vpack.c.b16 %v228, %v222
    %v313 = vpack.c.b16 %v235, %v229
    %v314 = vpack.c.b16 %v236, %v230
    %v315 = vpack.c.b16 %v237, %v231
    %v316 = vpack.c.b16 %v238, %v232
    %v317 = vpack.c.b16 %v239, %v233
    %v318 = vpack.c.b16 %v240, %v234
    %v319 = vpack.c.b16 %v247, %v241
    %v320 = vpack.c.b16 %v248, %v242
    %v321 = vpack.c.b16 %v249, %v243
    %v322 = vpack.c.b16 %v250, %v244
    %v323 = vpack.c.b16 %v251, %v245
    %v324 = vpack.c.b16 %v252, %v246
    %v325 = vpack.c.b16 %v259, %v253
    %v326 = vpack.c.b16 %v260, %v254
    %v327 = vpack.c.b16 %v261, %v255
    %v328 = vpack.c.b16 %v262, %v256
    %v329 = vpack.c.b16 %v263, %v257
    %v330 = vpack.c.b16 %v264, %v258
    %v331 = vpack.c.b16 %v271, %v265
    %v332 = vpack.c.b16 %v272, %v266
    %v333 = vpack.c.b16 %v273, %v267
    %v334 = vpack.c.b16 %v274, %v268
    %v335 = vpack.c.b16 %v275, %v269
    %v336 = vpack.c.b16 %v276, %v270
    %v337 = vpack.c.b16 %v283, %v277
    %v338 = vpack.c.b16 %v284, %v278
    %v339 = vpack.c.b16 %v285, %v279
    %v340 = vpack.c.b16 %v286, %v280
    %v341 = vpack.c.b16 %v287, %v281
    %v342 = vpack.c.b16 %v288, %v282
    %v343 = vpack.c.b16 %v295, %v289
    %v344 = vpack.c.b16 %v296, %v290
    %v345 = vpack.c.b16 %v297, %v291
    %v346 = vpack.c.b16 %v298, %v292
    %v347 = vpack.c.b16 %v299, %v293
    %v348 = vpack.c.b16 %v300, %v294
    %397 = vmatprep.subr.bf16.mxu0 %v344
    %398 = vmatpush1.bf16.msra.mxu0 %v343
    %399 = vmatprep.subr.bf16.mxu0 %v338
    %400 = vmatpush1.bf16.msra.mxu0 %v337
    %401 = vmatprep.subr.bf16.mxu0 %v332
    %402 = vmatpush1.bf16.msra.mxu0 %v331
    %403 = vmatprep.subr.bf16.mxu0 %v326
    %404 = vmatpush1.bf16.msra.mxu0 %v325
    %405 = vmatprep.subr.bf16.mxu0 %v320
    %406 = vmatpush1.bf16.msra.mxu0 %v319
    %407 = vmatprep.subr.bf16.mxu0 %v314
    %408 = vmatpush1.bf16.msra.mxu0 %v313
    %409 = vmatprep.subr.bf16.mxu0 %v308
    %410 = vmatpush1.bf16.msra.mxu0 %v307
    %411 = vmatprep.subr.bf16.mxu0 %v302
    %412 = vmatpush1.bf16.msra.mxu0 %v301
    %413 = vmatprep.subr.bf16.mxu0 0
    %414 = vmatpush2.bf16.msra.mxu0 0
    %415 = vmatprep.subr.bf16.mxu0 0
    %416 = vmatpush2.bf16.msra.mxu0 0
    %417 = vmatprep.subr.bf16.mxu0 0
    %418 = vmatpush2.bf16.msra.mxu0 0
    %419 = vmatprep.subr.bf16.mxu0 0
    %420 = vmatpush2.bf16.msra.mxu0 0
    %421 = vmatprep.subr.bf16.mxu0 0
    %422 = vmatpush2.bf16.msra.mxu0 0
    %423 = vmatprep.subr.bf16.mxu0 0
    %424 = vmatpush2.bf16.msra.mxu0 0
    %425 = vmatprep.subr.bf16.mxu0 0
    %426 = vmatpush2.bf16.msra.mxu0 0
    %427 = vmatprep.subr.bf16.mxu0 0
    %428 = vmatpush2.bf16.msra.mxu0 0
    %429 = vmatprep.mubr.bf16.mxu0 0
    %430 = vmatmul.mubr.bf16.gmra.mxu0 %v76
    %v431 = vpop.f32.mrf.mxu0
    %v432 = vadd.f32 %v130, %v431
    %v433 = vpop.f32.mrf.mxu0
    %v434 = vadd.f32 %v134, %v433
    %v435 = vpop.f32.mrf.mxu0
    %v436 = vpop.f32.mrf.mxu0
    %437 = vdwg.mxu0
    %438 = vmatprep.subr.bf16.mxu0 %v346
    %439 = vmatpush1.bf16.msra.mxu0 %v345
    %440 = vmatprep.subr.bf16.mxu0 %v340
    %441 = vmatpush1.bf16.msra.mxu0 %v339
    %442 = vmatprep.subr.bf16.mxu0 %v334
    %443 = vmatpush1.bf16.msra.mxu0 %v333
    %444 = vmatprep.subr.bf16.mxu0 %v328
    %445 = vmatpush1.bf16.msra.mxu0 %v327
    %446 = vmatprep.subr.bf16.mxu0 %v322
    %447 = vmatpush1.bf16.msra.mxu0 %v321
    %448 = vmatprep.subr.bf16.mxu0 %v316
    %449 = vmatpush1.bf16.msra.mxu0 %v315
    %450 = vmatprep.subr.bf16.mxu0 %v310
    %451 = vmatpush1.bf16.msra.mxu0 %v309
    %452 = vmatprep.subr.bf16.mxu0 %v304
    %453 = vmatpush1.bf16.msra.mxu0 %v303
    %454 = vmatprep.subr.bf16.mxu0 0
    %455 = vmatpush2.bf16.msra.mxu0 0
    %456 = vmatprep.subr.bf16.mxu0 0
    %457 = vmatpush2.bf16.msra.mxu0 0
    %458 = vmatprep.subr.bf16.mxu0 0
    %459 = vmatpush2.bf16.msra.mxu0 0
    %460 = vmatprep.subr.bf16.mxu0 0
    %461 = vmatpush2.bf16.msra.mxu0 0
    %462 = vmatprep.subr.bf16.mxu0 0
    %463 = vmatpush2.bf16.msra.mxu0 0
    %464 = vmatprep.subr.bf16.mxu0 0
    %465 = vmatpush2.bf16.msra.mxu0 0
    %466 = vmatprep.subr.bf16.mxu0 0
    %467 = vmatpush2.bf16.msra.mxu0 0
    %468 = vmatprep.subr.bf16.mxu0 0
    %469 = vmatpush2.bf16.msra.mxu0 0
    %470 = vmatprep.mubr.bf16.mxu0 0
    %471 = vmatmul.mubr.bf16.gmra.mxu0 %v76
    %v472 = vpop.f32.mrf.mxu0
    %v473 = vadd.f32 %v138, %v472
    %v474 = vpop.f32.mrf.mxu0
    %v475 = vadd.f32 %v142, %v474
    %v476 = vpop.f32.mrf.mxu0
    %v477 = vpop.f32.mrf.mxu0
    %478 = vdwg.mxu0
    %479 = vmatprep.subr.bf16.mxu0 %v348
    %480 = vmatpush1.bf16.msra.mxu0 %v347
    %481 = vmatprep.subr.bf16.mxu0 %v342
    %482 = vmatpush1.bf16.msra.mxu0 %v341
    %483 = vmatprep.subr.bf16.mxu0 %v336
    %484 = vmatpush1.bf16.msra.mxu0 %v335
    %485 = vmatprep.subr.bf16.mxu0 %v330
    %486 = vmatpush1.bf16.msra.mxu0 %v329
    %487 = vmatprep.subr.bf16.mxu0 %v324
    %488 = vmatpush1.bf16.msra.mxu0 %v323
    %489 = vmatprep.subr.bf16.mxu0 %v318
    %490 = vmatpush1.bf16.msra.mxu0 %v317
    %491 = vmatprep.subr.bf16.mxu0 %v312
    %492 = vmatpush1.bf16.msra.mxu0 %v311
    %493 = vmatprep.subr.bf16.mxu0 %v306
    %494 = vmatpush1.bf16.msra.mxu0 %v305
    %495 = vmatprep.subr.bf16.mxu0 0
    %496 = vmatpush2.bf16.msra.mxu0 0
    %497 = vmatprep.subr.bf16.mxu0 0
    %498 = vmatpush2.bf16.msra.mxu0 0
    %499 = vmatprep.subr.bf16.mxu0 0
    %500 = vmatpush2.bf16.msra.mxu0 0
    %501 = vmatprep.subr.bf16.mxu0 0
    %502 = vmatpush2.bf16.msra.mxu0 0
    %503 = vmatprep.subr.bf16.mxu0 0
    %504 = vmatpush2.bf16.msra.mxu0 0
    %505 = vmatprep.subr.bf16.mxu0 0
    %506 = vmatpush2.bf16.msra.mxu0 0
    %507 = vmatprep.subr.bf16.mxu0 0
    %508 = vmatpush2.bf16.msra.mxu0 0
    %509 = vmatprep.subr.bf16.mxu0 0
    %510 = vmatpush2.bf16.msra.mxu0 0
    %511 = vmatprep.mubr.bf16.mxu0 0
    %512 = vmatmul.mubr.bf16.gmra.mxu0 %v76
    %v513 = vpop.f32.mrf.mxu0
    %v514 = vadd.f32 %v146, %v513
    %v515 = vpop.f32.mrf.mxu0
    %v516 = vadd.f32 %v150, %v515
    %v517 = vpop.f32.mrf.mxu0
    %v518 = vpop.f32.mrf.mxu0
    %519 = vdwg.mxu0
    %v520 = vld [vmem:[%s1] sm:$0xff]
    %v521 = vpack.c.bf16 %v520, %v520
    %v522 = vld [vmem:[#allocation4] sm:$0xff]
    %v523 = vld [vmem:[#allocation4 + $0x8] sm:$0xf]
    %v524 = vld [vmem:[#allocation4 + $0xc] sm:$0xff]
    %v525 = vld [vmem:[#allocation4 + $0x14] sm:$0xf]
    %v526 = vld [vmem:[#allocation4 + $0x18] sm:$0xff]
    %v527 = vld [vmem:[#allocation4 + $0x20] sm:$0xf]
    %v528 = vld [vmem:[#allocation4 + $0x24] sm:$0xff]
    %v529 = vld [vmem:[#allocation4 + $0x2c] sm:$0xf]
    %v530 = vld [vmem:[#allocation4 + $0x30] sm:$0xff]
    %v531 = vld [vmem:[#allocation4 + $0x38] sm:$0xf]
    %v532 = vld [vmem:[#allocation4 + $0x3c] sm:$0xff]
    %v533 = vld [vmem:[#allocation4 + $0x44] sm:$0xf]
    %v534 = vld [vmem:[#allocation4 + $0x48] sm:$0xff]
    %v535 = vld [vmem:[#allocation4 + $0x50] sm:$0xf]
    %v536 = vld [vmem:[#allocation4 + $0x54] sm:$0xff]
    %v537 = vld [vmem:[#allocation4 + $0x5c] sm:$0xf]
    %v538 = vld [vmem:[#allocation4 + $0x60] sm:$0xff]
    %v539 = vld [vmem:[#allocation4 + $0x68] sm:$0xf]
    %v540 = vld [vmem:[#allocation4 + $0x6c] sm:$0xff]
    %v541 = vld [vmem:[#allocation4 + $0x74] sm:$0xf]
    %v542 = vld [vmem:[#allocation4 + $0x78] sm:$0xff]
    %v543 = vld [vmem:[#allocation4 + $0x80] sm:$0xf]
    %v544 = vld [vmem:[#allocation4 + $0x84] sm:$0xff]
    %v545 = vld [vmem:[#allocation4 + $0x8c] sm:$0xf]
    %v546 = vld [vmem:[#allocation4 + $0x90] sm:$0xff]
    %v547 = vld [vmem:[#allocation4 + $0x98] sm:$0xf]
    %v548 = vld [vmem:[#allocation4 + $0x9c] sm:$0xff]
    %v549 = vld [vmem:[#allocation4 + $0xa4] sm:$0xf]
    %v550 = vld [vmem:[#allocation4 + $0xa8] sm:$0xff]
    %v551 = vld [vmem:[#allocation4 + $0xb0] sm:$0xf]
    %v552 = vld [vmem:[#allocation4 + $0xb4] sm:$0xff]
    %v553 = vld [vmem:[#allocation4 + $0xbc] sm:$0xf]
    %v554 = vld [vmem:[%s6] sm:$0x7]
    %v556 = vlaneseq
    %v557 = vshrl.u32 %v556, 7
    %v558 = vsub.s32 0, %v557
    %v559 = vrot.slane %v554, %v558
    %v560 = vlaneseq
    %v561 = vshrl.u32 %v560, 7
    %v562 = vsub.s32 1, %v561
    %v563 = vrot.slane %v554, %v562
    %v564 = vlaneseq
    %v565 = vshrl.u32 %v564, 7
    %v566 = vsub.s32 2, %v565
    %v567 = vrot.slane %v554, %v566
    %v603 = vunpack.c.l.b16 %v522
    %v604 = vunpack.c.h.b16 %v522
    %v605 = vunpack.c.l.b16 %v523
    %v606 = vunpack.c.l.b16 %v524
    %v607 = vunpack.c.h.b16 %v524
    %v608 = vunpack.c.l.b16 %v525
    %v609 = vunpack.c.l.b16 %v526
    %v610 = vunpack.c.h.b16 %v526
    %v611 = vunpack.c.l.b16 %v527
    %v612 = vunpack.c.l.b16 %v528
    %v613 = vunpack.c.h.b16 %v528
    %v614 = vunpack.c.l.b16 %v529
    %v615 = vunpack.c.l.b16 %v530
    %v616 = vunpack.c.h.b16 %v530
    %v617 = vunpack.c.l.b16 %v531
    %v618 = vunpack.c.l.b16 %v532
    %v619 = vunpack.c.h.b16 %v532
    %v620 = vunpack.c.l.b16 %v533
    %v621 = vunpack.c.l.b16 %v534
    %v622 = vunpack.c.h.b16 %v534
    %v623 = vunpack.c.l.b16 %v535
    %v624 = vunpack.c.l.b16 %v536
    %v625 = vunpack.c.h.b16 %v536
    %v626 = vunpack.c.l.b16 %v537
    %v627 = vunpack.c.l.b16 %v538
    %v628 = vunpack.c.h.b16 %v538
    %v629 = vunpack.c.l.b16 %v539
    %v630 = vunpack.c.l.b16 %v540
    %v631 = vunpack.c.h.b16 %v540
    %v632 = vunpack.c.l.b16 %v541
    %v633 = vunpack.c.l.b16 %v542
    %v634 = vunpack.c.h.b16 %v542
    %v635 = vunpack.c.l.b16 %v543
    %v636 = vunpack.c.l.b16 %v544
    %v637 = vunpack.c.h.b16 %v544
    %v638 = vunpack.c.l.b16 %v545
    %v639 = vunpack.c.l.b16 %v546
    %v640 = vunpack.c.h.b16 %v546
    %v641 = vunpack.c.l.b16 %v547
    %v642 = vunpack.c.l.b16 %v548
    %v643 = vunpack.c.h.b16 %v548
    %v644 = vunpack.c.l.b16 %v549
    %v645 = vunpack.c.l.b16 %v550
    %v646 = vunpack.c.h.b16 %v550
    %v647 = vunpack.c.l.b16 %v551
    %v648 = vunpack.c.l.b16 %v552
    %v649 = vunpack.c.h.b16 %v552
    %v650 = vunpack.c.l.b16 %v553
    %v651 = vpack.c.b16 %v606, %v603
    %v652 = vpack.c.b16 %v607, %v604
    %v653 = vpack.c.b16 %v608, %v605
    %v654 = vpack.c.b16 %v612, %v609
    %v655 = vpack.c.b16 %v613, %v610
    %v656 = vpack.c.b16 %v614, %v611
    %v657 = vpack.c.b16 %v618, %v615
    %v658 = vpack.c.b16 %v619, %v616
    %v659 = vpack.c.b16 %v620, %v617
    %v660 = vpack.c.b16 %v624, %v621
    %v661 = vpack.c.b16 %v625, %v622
    %v662 = vpack.c.b16 %v626, %v623
    %v663 = vpack.c.b16 %v630, %v627
    %v664 = vpack.c.b16 %v631, %v628
    %v665 = vpack.c.b16 %v632, %v629
    %v666 = vpack.c.b16 %v636, %v633
    %v667 = vpack.c.b16 %v637, %v634
    %v668 = vpack.c.b16 %v638, %v635
    %v669 = vpack.c.b16 %v642, %v639
    %v670 = vpack.c.b16 %v643, %v640
    %v671 = vpack.c.b16 %v644, %v641
    %v672 = vpack.c.b16 %v648, %v645
    %v673 = vpack.c.b16 %v649, %v646
    %v674 = vpack.c.b16 %v650, %v647
    %699 = vmatprep.subr.bf16.mxu0 %v673
    %700 = vmatpush1.bf16.msra.mxu0 %v672
    %701 = vmatprep.subr.bf16.mxu0 %v670
    %702 = vmatpush1.bf16.msra.mxu0 %v669
    %703 = vmatprep.subr.bf16.mxu0 %v667
    %704 = vmatpush1.bf16.msra.mxu0 %v666
    %705 = vmatprep.subr.bf16.mxu0 %v664
    %706 = vmatpush1.bf16.msra.mxu0 %v663
    %707 = vmatprep.subr.bf16.mxu0 %v661
    %708 = vmatpush1.bf16.msra.mxu0 %v660
    %709 = vmatprep.subr.bf16.mxu0 %v658
    %710 = vmatpush1.bf16.msra.mxu0 %v657
    %711 = vmatprep.subr.bf16.mxu0 %v655
    %712 = vmatpush1.bf16.msra.mxu0 %v654
    %713 = vmatprep.subr.bf16.mxu0 %v652
    %714 = vmatpush1.bf16.msra.mxu0 %v651
    %715 = vmatprep.subr.bf16.mxu0 0
    %716 = vmatpush2.bf16.msra.mxu0 0
    %717 = vmatprep.subr.bf16.mxu0 0
    %718 = vmatpush2.bf16.msra.mxu0 0
    %719 = vmatprep.subr.bf16.mxu0 0
    %720 = vmatpush2.bf16.msra.mxu0 0
    %721 = vmatprep.subr.bf16.mxu0 0
    %722 = vmatpush2.bf16.msra.mxu0 0
    %723 = vmatprep.subr.bf16.mxu0 0
    %724 = vmatpush2.bf16.msra.mxu0 0
    %725 = vmatprep.subr.bf16.mxu0 0
    %726 = vmatpush2.bf16.msra.mxu0 0
    %727 = vmatprep.subr.bf16.mxu0 0
    %728 = vmatpush2.bf16.msra.mxu0 0
    %729 = vmatprep.subr.bf16.mxu0 0
    %730 = vmatpush2.bf16.msra.mxu0 0
    %731 = vmatprep.mubr.bf16.mxu0 0
    %732 = vmatmul.mubr.bf16.gmra.mxu0 %v521
    %v733 = vpop.f32.mrf.mxu0
    %v734 = vadd.f32 %v559, %v733
    %v735 = vpop.f32.mrf.mxu0
    %v736 = vadd.f32 %v563, %v735
    %v737 = vpop.f32.mrf.mxu0
    %v738 = vpop.f32.mrf.mxu0
    %739 = vdwg.mxu0
    %740 = vmatprep.subr.bf16.mxu0 0
    %741 = vmatpush1.bf16.msra.mxu0 %v674
    %742 = vmatprep.subr.bf16.mxu0 0
    %743 = vmatpush1.bf16.msra.mxu0 %v671
    %744 = vmatprep.subr.bf16.mxu0 0
    %745 = vmatpush1.bf16.msra.mxu0 %v668
    %746 = vmatprep.subr.bf16.mxu0 0
    %747 = vmatpush1.bf16.msra.mxu0 %v665
    %748 = vmatprep.subr.bf16.mxu0 0
    %749 = vmatpush1.bf16.msra.mxu0 %v662
    %750 = vmatprep.subr.bf16.mxu0 0
    %751 = vmatpush1.bf16.msra.mxu0 %v659
    %752 = vmatprep.subr.bf16.mxu0 0
    %753 = vmatpush1.bf16.msra.mxu0 %v656
    %754 = vmatprep.subr.bf16.mxu0 0
    %755 = vmatpush1.bf16.msra.mxu0 %v653
    %756 = vmatprep.subr.bf16.mxu0 0
    %757 = vmatpush2.bf16.msra.mxu0 0
    %758 = vmatprep.subr.bf16.mxu0 0
    %759 = vmatpush2.bf16.msra.mxu0 0
    %760 = vmatprep.subr.bf16.mxu0 0
    %761 = vmatpush2.bf16.msra.mxu0 0
    %762 = vmatprep.subr.bf16.mxu0 0
    %763 = vmatpush2.bf16.msra.mxu0 0
    %764 = vmatprep.subr.bf16.mxu0 0
    %765 = vmatpush2.bf16.msra.mxu0 0
    %766 = vmatprep.subr.bf16.mxu0 0
    %767 = vmatpush2.bf16.msra.mxu0 0
    %768 = vmatprep.subr.bf16.mxu0 0
    %769 = vmatpush2.bf16.msra.mxu0 0
    %770 = vmatprep.subr.bf16.mxu0 0
    %771 = vmatpush2.bf16.msra.mxu0 0
    %772 = vmatprep.mubr.bf16.mxu0 0
    %773 = vmatmul.mubr.bf16.gmra.mxu0 %v521
    %v774 = vpop.f32.mrf.mxu0
    %v775 = vadd.f32 %v567, %v774
    %v776 = vpop.f32.mrf.mxu0
    %v777 = vpop.f32.mrf.mxu0
    %v778 = vpop.f32.mrf.mxu0
    %779 = vdwg.mxu0
    %v780 = vadd.f32 %v432, %v734
    %v781 = vxor.u32 %v780, 2147483648
    %v782 = vmul.f32 %v781, 1.442695
    %v783 = vpow.pop %v782
    %v784 = vadd.f32 %v783, 1.0
    %v785 = vrcp.pop %v784
    %v786 = vmul.f32 1.0, %v785
    %v787 = vadd.f32 %v434, %v736
    %v788 = vxor.u32 %v787, 2147483648
    %v789 = vmul.f32 %v788, 1.442695
    %v790 = vpow.pop %v789
    %v791 = vadd.f32 %v790, 1.0
    %v792 = vrcp.pop %v791
    %v793 = vmul.f32 1.0, %v792
    %v794 = vmul.f32 %v786, %v775
    %v795 = vadd.f32 %v473, %v794
    %v796 = vtanh.pop %v795
    %v797 = vsub.f32 1.0, %v793
    %v798 = vmul.f32 %v797, %v796
    %v799 = vmul.f32 %v793, %v520
    %v800 = vadd.f32 %v798, %v799
    %s801 = scalar_lea.vmem %s1, 8
    %v802 = vld [vmem:[%s801] sm:$0xff]
    %v803 = vpack.c.bf16 %v802, %v802
    %s804 = scalar_lea.vmem [#allocation4], 192
    %v805 = vld [vmem:[%s804] sm:$0xff]
    %v806 = vld [vmem:[%s804 + $0x8] sm:$0xf]
    %v807 = vld [vmem:[%s804 + $0xc] sm:$0xff]
    %v808 = vld [vmem:[%s804 + $0x14] sm:$0xf]
    %v809 = vld [vmem:[%s804 + $0x18] sm:$0xff]
    %v810 = vld [vmem:[%s804 + $0x20] sm:$0xf]
    %v811 = vld [vmem:[%s804 + $0x24] sm:$0xff]
    %v812 = vld [vmem:[%s804 + $0x2c] sm:$0xf]
    %v813 = vld [vmem:[%s804 + $0x30] sm:$0xff]
    %v814 = vld [vmem:[%s804 + $0x38] sm:$0xf]
    %v815 = vld [vmem:[%s804 + $0x3c] sm:$0xff]
    %v816 = vld [vmem:[%s804 + $0x44] sm:$0xf]
    %v817 = vld [vmem:[%s804 + $0x48] sm:$0xff]
    %v818 = vld [vmem:[%s804 + $0x50] sm:$0xf]
    %v819 = vld [vmem:[%s804 + $0x54] sm:$0xff]
    %v820 = vld [vmem:[%s804 + $0x5c] sm:$0xf]
    %v821 = vld [vmem:[%s804 + $0x60] sm:$0xff]
    %v822 = vld [vmem:[%s804 + $0x68] sm:$0xf]
    %v823 = vld [vmem:[%s804 + $0x6c] sm:$0xff]
    %v824 = vld [vmem:[%s804 + $0x74] sm:$0xf]
    %v825 = vld [vmem:[%s804 + $0x78] sm:$0xff]
    %v826 = vld [vmem:[%s804 + $0x80] sm:$0xf]
    %v827 = vld [vmem:[%s804 + $0x84] sm:$0xff]
    %v828 = vld [vmem:[%s804 + $0x8c] sm:$0xf]
    %v829 = vld [vmem:[%s804 + $0x90] sm:$0xff]
    %v830 = vld [vmem:[%s804 + $0x98] sm:$0xf]
    %v831 = vld [vmem:[%s804 + $0x9c] sm:$0xff]
    %v832 = vld [vmem:[%s804 + $0xa4] sm:$0xf]
    %v833 = vld [vmem:[%s804 + $0xa8] sm:$0xff]
    %v834 = vld [vmem:[%s804 + $0xb0] sm:$0xf]
    %v835 = vld [vmem:[%s804 + $0xb4] sm:$0xff]
    %v836 = vld [vmem:[%s804 + $0xbc] sm:$0xf]
    %s837 = scalar_lea.vmem %s6, 3
    %v838 = vld [vmem:[%s837] sm:$0x7]
    %v840 = vlaneseq
    %v841 = vshrl.u32 %v840, 7
    %v842 = vsub.s32 0, %v841
    %v843 = vrot.slane %v838, %v842
    %v844 = vlaneseq
    %v845 = vshrl.u32 %v844, 7
    %v846 = vsub.s32 1, %v845
    %v847 = vrot.slane %v838, %v846
    %v848 = vlaneseq
    %v849 = vshrl.u32 %v848, 7
    %v850 = vsub.s32 2, %v849
    %v851 = vrot.slane %v838, %v850
    %v887 = vunpack.c.l.b16 %v805
    %v888 = vunpack.c.h.b16 %v805
    %v889 = vunpack.c.l.b16 %v806
    %v890 = vunpack.c.l.b16 %v807
    %v891 = vunpack.c.h.b16 %v807
    %v892 = vunpack.c.l.b16 %v808
    %v893 = vunpack.c.l.b16 %v809
    %v894 = vunpack.c.h.b16 %v809
    %v895 = vunpack.c.l.b16 %v810
    %v896 = vunpack.c.l.b16 %v811
    %v897 = vunpack.c.h.b16 %v811
    %v898 = vunpack.c.l.b16 %v812
    %v899 = vunpack.c.l.b16 %v813
    %v900 = vunpack.c.h.b16 %v813
    %v901 = vunpack.c.l.b16 %v814
    %v902 = vunpack.c.l.b16 %v815
    %v903 = vunpack.c.h.b16 %v815
    %v904 = vunpack.c.l.b16 %v816
    %v905 = vunpack.c.l.b16 %v817
    %v906 = vunpack.c.h.b16 %v817
    %v907 = vunpack.c.l.b16 %v818
    %v908 = vunpack.c.l.b16 %v819
    %v909 = vunpack.c.h.b16 %v819
    %v910 = vunpack.c.l.b16 %v820
    %v911 = vunpack.c.l.b16 %v821
    %v912 = vunpack.c.h.b16 %v821
    %v913 = vunpack.c.l.b16 %v822
    %v914 = vunpack.c.l.b16 %v823
    %v915 = vunpack.c.h.b16 %v823
    %v916 = vunpack.c.l.b16 %v824
    %v917 = vunpack.c.l.b16 %v825
    %v918 = vunpack.c.h.b16 %v825
    %v919 = vunpack.c.l.b16 %v826
    %v920 = vunpack.c.l.b16 %v827
    %v921 = vunpack.c.h.b16 %v827
    %v922 = vunpack.c.l.b16 %v828
    %v923 = vunpack.c.l.b16 %v829
    %v924 = vunpack.c.h.b16 %v829
    %v925 = vunpack.c.l.b16 %v830
    %v926 = vunpack.c.l.b16 %v831
    %v927 = vunpack.c.h.b16 %v831
    %v928 = vunpack.c.l.b16 %v832
    %v929 = vunpack.c.l.b16 %v833
    %v930 = vunpack.c.h.b16 %v833
    %v931 = vunpack.c.l.b16 %v834
    %v932 = vunpack.c.l.b16 %v835
    %v933 = vunpack.c.h.b16 %v835
    %v934 = vunpack.c.l.b16 %v836
    %v935 = vpack.c.b16 %v890, %v887
    %v936 = vpack.c.b16 %v891, %v888
    %v937 = vpack.c.b16 %v892, %v889
    %v938 = vpack.c.b16 %v896, %v893
    %v939 = vpack.c.b16 %v897, %v894
    %v940 = vpack.c.b16 %v898, %v895
    %v941 = vpack.c.b16 %v902, %v899
    %v942 = vpack.c.b16 %v903, %v900
    %v943 = vpack.c.b16 %v904, %v901
    %v944 = vpack.c.b16 %v908, %v905
    %v945 = vpack.c.b16 %v909, %v906
    %v946 = vpack.c.b16 %v910, %v907
    %v947 = vpack.c.b16 %v914, %v911
    %v948 = vpack.c.b16 %v915, %v912
    %v949 = vpack.c.b16 %v916, %v913
    %v950 = vpack.c.b16 %v920, %v917
    %v951 = vpack.c.b16 %v921, %v918
    %v952 = vpack.c.b16 %v922, %v919
    %v953 = vpack.c.b16 %v926, %v923
    %v954 = vpack.c.b16 %v927, %v924
    %v955 = vpack.c.b16 %v928, %v925
    %v956 = vpack.c.b16 %v932, %v929
    %v957 = vpack.c.b16 %v933, %v930
    %v958 = vpack.c.b16 %v934, %v931
    %983 = vmatprep.subr.bf16.mxu0 %v957
    %984 = vmatpush1.bf16.msra.mxu0 %v956
    %985 = vmatprep.subr.bf16.mxu0 %v954
    %986 = vmatpush1.bf16.msra.mxu0 %v953
    %987 = vmatprep.subr.bf16.mxu0 %v951
    %988 = vmatpush1.bf16.msra.mxu0 %v950
    %989 = vmatprep.subr.bf16.mxu0 %v948
    %990 = vmatpush1.bf16.msra.mxu0 %v947
    %991 = vmatprep.subr.bf16.mxu0 %v945
    %992 = vmatpush1.bf16.msra.mxu0 %v944
    %993 = vmatprep.subr.bf16.mxu0 %v942
    %994 = vmatpush1.bf16.msra.mxu0 %v941
    %995 = vmatprep.subr.bf16.mxu0 %v939
    %996 = vmatpush1.bf16.msra.mxu0 %v938
    %997 = vmatprep.subr.bf16.mxu0 %v936
    %998 = vmatpush1.bf16.msra.mxu0 %v935
    %999 = vmatprep.subr.bf16.mxu0 0
    %1000 = vmatpush2.bf16.msra.mxu0 0
    %1001 = vmatprep.subr.bf16.mxu0 0
    %1002 = vmatpush2.bf16.msra.mxu0 0
    %1003 = vmatprep.subr.bf16.mxu0 0
    %1004 = vmatpush2.bf16.msra.mxu0 0
    %1005 = vmatprep.subr.bf16.mxu0 0
    %1006 = vmatpush2.bf16.msra.mxu0 0
    %1007 = vmatprep.subr.bf16.mxu0 0
    %1008 = vmatpush2.bf16.msra.mxu0 0
    %1009 = vmatprep.subr.bf16.mxu0 0
    %1010 = vmatpush2.bf16.msra.mxu0 0
    %1011 = vmatprep.subr.bf16.mxu0 0
    %1012 = vmatpush2.bf16.msra.mxu0 0
    %1013 = vmatprep.subr.bf16.mxu0 0
    %1014 = vmatpush2.bf16.msra.mxu0 0
    %1015 = vmatprep.mubr.bf16.mxu0 0
    %1016 = vmatmul.mubr.bf16.gmra.mxu0 %v803
    %v1017 = vpop.f32.mrf.mxu0
    %v1018 = vadd.f32 %v843, %v1017
    %v1019 = vpop.f32.mrf.mxu0
    %v1020 = vadd.f32 %v847, %v1019
    %v1021 = vpop.f32.mrf.mxu0
    %v1022 = vpop.f32.mrf.mxu0
    %1023 = vdwg.mxu0
    %1024 = vmatprep.subr.bf16.mxu0 0
    %1025 = vmatpush1.bf16.msra.mxu0 %v958
    %1026 = vmatprep.subr.bf16.mxu0 0
    %1027 = vmatpush1.bf16.msra.mxu0 %v955
    %1028 = vmatprep.subr.bf16.mxu0 0
    %1029 = vmatpush1.bf16.msra.mxu0 %v952
    %1030 = vmatprep.subr.bf16.mxu0 0
    %1031 = vmatpush1.bf16.msra.mxu0 %v949
    %1032 = vmatprep.subr.bf16.mxu0 0
    %1033 = vmatpush1.bf16.msra.mxu0 %v946
    %1034 = vmatprep.subr.bf16.mxu0 0
    %1035 = vmatpush1.bf16.msra.mxu0 %v943
    %1036 = vmatprep.subr.bf16.mxu0 0
    %1037 = vmatpush1.bf16.msra.mxu0 %v940
    %1038 = vmatprep.subr.bf16.mxu0 0
    %1039 = vmatpush1.bf16.msra.mxu0 %v937
    %1040 = vmatprep.subr.bf16.mxu0 0
    %1041 = vmatpush2.bf16.msra.mxu0 0
    %1042 = vmatprep.subr.bf16.mxu0 0
    %1043 = vmatpush2.bf16.msra.mxu0 0
    %1044 = vmatprep.subr.bf16.mxu0 0
    %1045 = vmatpush2.bf16.msra.mxu0 0
    %1046 = vmatprep.subr.bf16.mxu0 0
    %1047 = vmatpush2.bf16.msra.mxu0 0
    %1048 = vmatprep.subr.bf16.mxu0 0
    %1049 = vmatpush2.bf16.msra.mxu0 0
    %1050 = vmatprep.subr.bf16.mxu0 0
    %1051 = vmatpush2.bf16.msra.mxu0 0
    %1052 = vmatprep.subr.bf16.mxu0 0
    %1053 = vmatpush2.bf16.msra.mxu0 0
    %1054 = vmatprep.subr.bf16.mxu0 0
    %1055 = vmatpush2.bf16.msra.mxu0 0
    %1056 = vmatprep.mubr.bf16.mxu0 0
    %1057 = vmatmul.mubr.bf16.gmra.mxu0 %v803
    %v1058 = vpop.f32.mrf.mxu0
    %v1059 = vadd.f32 %v851, %v1058
    %v1060 = vpop.f32.mrf.mxu0
    %v1061 = vpop.f32.mrf.mxu0
    %v1062 = vpop.f32.mrf.mxu0
    %1063 = vdwg.mxu0
    %v1064 = vadd.f32 %v475, %v1018
    %v1065 = vxor.u32 %v1064, 2147483648
    %v1066 = vmul.f32 %v1065, 1.442695
    %v1067 = vpow.pop %v1066
    %v1068 = vadd.f32 %v1067, 1.0
    %v1069 = vrcp.pop %v1068
    %v1070 = vmul.f32 1.0, %v1069
    %v1071 = vadd.f32 %v514, %v1020
    %v1072 = vxor.u32 %v1071, 2147483648
    %v1073 = vmul.f32 %v1072, 1.442695
    %v1074 = vpow.pop %v1073
    %v1075 = vadd.f32 %v1074, 1.0
    %v1076 = vrcp.pop %v1075
    %v1077 = vmul.f32 1.0, %v1076
    %v1078 = vmul.f32 %v1070, %v1059
    %v1079 = vadd.f32 %v516, %v1078
    %v1080 = vtanh.pop %v1079
    %v1081 = vsub.f32 1.0, %v1077
    %v1082 = vmul.f32 %v1081, %v1080
    %v1083 = vmul.f32 %v1077, %v802
    %v1084 = vadd.f32 %v1082, %v1083
    %1085 = vst [vmem:[%s10] sm:$0xff] %v800
    %s1086 = scalar_lea.vmem %s10, 8
    %1087 = vst [vmem:[%s1086] sm:$0xff] %v1084
    %v1088 = vadd.f32 %v800, %v1084
    %v1089 = vld [vmem:[%s2] sm:$0xf]
    %v1090 = vld [vmem:[%s2 + $0x4] sm:$0xf]
    %v1091 = vld [vmem:[%s2 + $0x8] sm:$0xf]
    %v1092 = vld [vmem:[%s2 + $0xc] sm:$0xf]
    %v1093 = vld [vmem:[%s2 + $0x10] sm:$0xf]
    %v1094 = vld [vmem:[%s2 + $0x14] sm:$0xf]
    %v1095 = vld [vmem:[%s2 + $0x18] sm:$0xf]
    %v1096 = vld [vmem:[%s2 + $0x1c] sm:$0xf]
    %v1098 = vcombine.high %v1088, %v1088
    %v1100 = vunpack.c.l.s4 1966171168
    %v1101 = vunpack.c.0.s8 %v1100
    %v1102 = vlaneseq
    %v1103 = vshrl.u32 %v1102, 7
    %v1104 = vsub.s32 %v1101, %v1103
    %v1105 = vrot.slane %v1088, %v1104
    %v1107 = vunpack.c.l.s4 1966171168
    %v1108 = vunpack.c.0.s8 %v1107
    %v1109 = vlaneseq
    %v1110 = vshrl.u32 %v1109, 7
    %v1111 = vsub.s32 %v1108, %v1110
    %v1112 = vrot.slane %v1098, %v1111
    %v1113 = vcombine.high %v1105, %v1105
    %v1114 = vcombine.high %v1112, %v1112
    %v1116 = vunpack.c.l.s4 1966171168
    %v1117 = vunpack.c.0.s8 %v1116
    %v1118 = vlaneseq
    %v1119 = vshrl.u32 %v1118, 7
    %v1120 = vsub.s32 %v1117, %v1119
    %v1121 = vrot.slane %v1105, %v1120
    %v1123 = vunpack.c.l.s4 1966171168
    %v1124 = vunpack.c.0.s8 %v1123
    %v1125 = vlaneseq
    %v1126 = vshrl.u32 %v1125, 7
    %v1127 = vsub.s32 %v1124, %v1126
    %v1128 = vrot.slane %v1112, %v1127
    %v1130 = vunpack.c.l.s4 1966171168
    %v1131 = vunpack.c.0.s8 %v1130
    %v1132 = vlaneseq
    %v1133 = vshrl.u32 %v1132, 7
    %v1134 = vsub.s32 %v1131, %v1133
    %v1135 = vrot.slane %v1113, %v1134
    %v1137 = vunpack.c.l.s4 1966171168
    %v1138 = vunpack.c.0.s8 %v1137
    %v1139 = vlaneseq
    %v1140 = vshrl.u32 %v1139, 7
    %v1141 = vsub.s32 %v1138, %v1140
    %v1142 = vrot.slane %v1114, %v1141
    %v1143 = vcombine.high %v1121, %v1121
    %v1144 = vcombine.high %v1128, %v1128
    %v1145 = vcombine.high %v1135, %v1135
    %v1146 = vcombine.high %v1142, %v1142
    %v1155 = vpack.c.bf16 %v1121, %v1121
    %v1156 = vpack.c.bf16 %v1135, %v1135
    %v1157 = vpack.c.bf16 %v1143, %v1143
    %v1158 = vpack.c.bf16 %v1145, %v1145
    %v1159 = vpack.c.bf16 %v1128, %v1128
    %v1160 = vpack.c.bf16 %v1142, %v1142
    %v1161 = vpack.c.bf16 %v1144, %v1144
    %v1162 = vpack.c.bf16 %v1146, %v1146
    %1163 = vmatprep.subr.bf16.mxu0 0
    %1164 = vmatpush1.bf16.xpose.msra.mxu0 0
    %1165 = vmatprep.subr.bf16.mxu0 0
    %1166 = vmatpush1.bf16.xpose.msra.mxu0 0
    %1167 = vmatprep.subr.bf16.mxu0 0
    %1168 = vmatpush1.bf16.xpose.msra.mxu0 0
    %1169 = vmatprep.subr.bf16.mxu0 0
    %1170 = vmatpush1.bf16.xpose.msra.mxu0 0
    %1171 = vmatprep.subr.bf16.mxu0 0
    %1172 = vmatpush1.bf16.xpose.msra.mxu0 0
    %1173 = vmatprep.subr.bf16.mxu0 0
    %1174 = vmatpush1.bf16.xpose.msra.mxu0 0
    %1175 = vmatprep.subr.bf16.mxu0 0
    %1176 = vmatpush1.bf16.xpose.msra.mxu0 0
    %1177 = vmatprep.subr.bf16.mxu0 0
    %1178 = vmatpush1.bf16.xpose.msra.mxu0 %v1089
    %1179 = vmatprep.subr.bf16.mxu0 0
    %1180 = vmatpush2.bf16.xpose.msra.mxu0 0
    %1181 = vmatprep.subr.bf16.mxu0 0
    %1182 = vmatpush2.bf16.xpose.msra.mxu0 0
    %1183 = vmatprep.subr.bf16.mxu0 0
    %1184 = vmatpush2.bf16.xpose.msra.mxu0 0
    %1185 = vmatprep.subr.bf16.mxu0 0
    %1186 = vmatpush2.bf16.xpose.msra.mxu0 0
    %1187 = vmatprep.subr.bf16.mxu0 0
    %1188 = vmatpush2.bf16.xpose.msra.mxu0 0
    %1189 = vmatprep.subr.bf16.mxu0 0
    %1190 = vmatpush2.bf16.xpose.msra.mxu0 0
    %1191 = vmatprep.subr.bf16.mxu0 0
    %1192 = vmatpush2.bf16.xpose.msra.mxu0 0
    %1193 = vmatprep.subr.bf16.mxu0 0
    %1194 = vmatpush2.bf16.xpose.msra.mxu0 0
    %1195 = vmatprep.mubr.bf16.mxu0 0
    %1196 = vmatmul.mubr.bf16.gmra.mxu0 %v1155
    %v1197 = vpop.f32.mrf.mxu0
    %v1198 = vadd.f32 0.0, %v1197
    %v1199 = vpop.f32.mrf.mxu0
    %v1200 = vpop.f32.mrf.mxu0
    %v1201 = vpop.f32.mrf.mxu0
    %1202 = vdwg.mxu0
    %1203 = vmatprep.subr.bf16.mxu0 0
    %1204 = vmatpush1.bf16.xpose.msra.mxu0 0
    %1205 = vmatprep.subr.bf16.mxu0 0
    %1206 = vmatpush1.bf16.xpose.msra.mxu0 0
    %1207 = vmatprep.subr.bf16.mxu0 0
    %1208 = vmatpush1.bf16.xpose.msra.mxu0 0
    %1209 = vmatprep.subr.bf16.mxu0 0
    %1210 = vmatpush1.bf16.xpose.msra.mxu0 0
    %1211 = vmatprep.subr.bf16.mxu0 0
    %1212 = vmatpush1.bf16.xpose.msra.mxu0 0
    %1213 = vmatprep.subr.bf16.mxu0 0
    %1214 = vmatpush1.bf16.xpose.msra.mxu0 0
    %1215 = vmatprep.subr.bf16.mxu0 0
    %1216 = vmatpush1.bf16.xpose.msra.mxu0 0
    %1217 = vmatprep.subr.bf16.mxu0 0
    %1218 = vmatpush1.bf16.xpose.msra.mxu0 %v1090
    %1219 = vmatprep.subr.bf16.mxu0 0
    %1220 = vmatpush2.bf16.xpose.msra.mxu0 0
    %1221 = vmatprep.subr.bf16.mxu0 0
    %1222 = vmatpush2.bf16.xpose.msra.mxu0 0
    %1223 = vmatprep.subr.bf16.mxu0 0
    %1224 = vmatpush2.bf16.xpose.msra.mxu0 0
    %1225 = vmatprep.subr.bf16.mxu0 0
    %1226 = vmatpush2.bf16.xpose.msra.mxu0 0
    %1227 = vmatprep.subr.bf16.mxu0 0
    %1228 = vmatpush2.bf16.xpose.msra.mxu0 0
    %1229 = vmatprep.subr.bf16.mxu0 0
    %1230 = vmatpush2.bf16.xpose.msra.mxu0 0
    %1231 = vmatprep.subr.bf16.mxu0 0
    %1232 = vmatpush2.bf16.xpose.msra.mxu0 0
    %1233 = vmatprep.subr.bf16.mxu0 0
    %1234 = vmatpush2.bf16.xpose.msra.mxu0 0
    %1235 = vmatprep.mubr.bf16.mxu0 0
    %1236 = vmatmul.mubr.bf16.gmra.mxu0 %v1156
    %v1237 = vpop.f32.mrf.mxu0
    %v1238 = vadd.f32 0.0, %v1237
    %v1239 = vpop.f32.mrf.mxu0
    %v1240 = vpop.f32.mrf.mxu0
    %v1241 = vpop.f32.mrf.mxu0
    %1242 = vdwg.mxu0
    %1243 = vmatprep.subr.bf16.mxu0 0
    %1244 = vmatpush1.bf16.xpose.msra.mxu0 0
    %1245 = vmatprep.subr.bf16.mxu0 0
    %1246 = vmatpush1.bf16.xpose.msra.mxu0 0
    %1247 = vmatprep.subr.bf16.mxu0 0
    %1248 = vmatpush1.bf16.xpose.msra.mxu0 0
    %1249 = vmatprep.subr.bf16.mxu0 0
    %1250 = vmatpush1.bf16.xpose.msra.mxu0 0
    %1251 = vmatprep.subr.bf16.mxu0 0
    %1252 = vmatpush1.bf16.xpose.msra.mxu0 0
    %1253 = vmatprep.subr.bf16.mxu0 0
    %1254 = vmatpush1.bf16.xpose.msra.mxu0 0
    %1255 = vmatprep.subr.bf16.mxu0 0
    %1256 = vmatpush1.bf16.xpose.msra.mxu0 0
    %1257 = vmatprep.subr.bf16.mxu0 0
    %1258 = vmatpush1.bf16.xpose.msra.mxu0 %v1091
    %1259 = vmatprep.subr.bf16.mxu0 0
    %1260 = vmatpush2.bf16.xpose.msra.mxu0 0
    %1261 = vmatprep.subr.bf16.mxu0 0
    %1262 = vmatpush2.bf16.xpose.msra.mxu0 0
    %1263 = vmatprep.subr.bf16.mxu0 0
    %1264 = vmatpush2.bf16.xpose.msra.mxu0 0
    %1265 = vmatprep.subr.bf16.mxu0 0
    %1266 = vmatpush2.bf16.xpose.msra.mxu0 0
    %1267 = vmatprep.subr.bf16.mxu0 0
    %1268 = vmatpush2.bf16.xpose.msra.mxu0 0
    %1269 = vmatprep.subr.bf16.mxu0 0
    %1270 = vmatpush2.bf16.xpose.msra.mxu0 0
    %1271 = vmatprep.subr.bf16.mxu0 0
    %1272 = vmatpush2.bf16.xpose.msra.mxu0 0
    %1273 = vmatprep.subr.bf16.mxu0 0
    %1274 = vmatpush2.bf16.xpose.msra.mxu0 0
    %1275 = vmatprep.mubr.bf16.mxu0 0
    %1276 = vmatmul.mubr.bf16.gmra.mxu0 %v1157
    %v1277 = vpop.f32.mrf.mxu0
    %v1278 = vadd.f32 0.0, %v1277
    %v1279 = vpop.f32.mrf.mxu0
    %v1280 = vpop.f32.mrf.mxu0
    %v1281 = vpop.f32.mrf.mxu0
    %1282 = vdwg.mxu0
    %1283 = vmatprep.subr.bf16.mxu0 0
    %1284 = vmatpush1.bf16.xpose.msra.mxu0 0
    %1285 = vmatprep.subr.bf16.mxu0 0
    %1286 = vmatpush1.bf16.xpose.msra.mxu0 0
    %1287 = vmatprep.subr.bf16.mxu0 0
    %1288 = vmatpush1.bf16.xpose.msra.mxu0 0
    %1289 = vmatprep.subr.bf16.mxu0 0
    %1290 = vmatpush1.bf16.xpose.msra.mxu0 0
    %1291 = vmatprep.subr.bf16.mxu0 0
    %1292 = vmatpush1.bf16.xpose.msra.mxu0 0
    %1293 = vmatprep.subr.bf16.mxu0 0
    %1294 = vmatpush1.bf16.xpose.msra.mxu0 0
    %1295 = vmatprep.subr.bf16.mxu0 0
    %1296 = vmatpush1.bf16.xpose.msra.mxu0 0
    %1297 = vmatprep.subr.bf16.mxu0 0
    %1298 = vmatpush1.bf16.xpose.msra.mxu0 %v1092
    %1299 = vmatprep.subr.bf16.mxu0 0
    %1300 = vmatpush2.bf16.xpose.msra.mxu0 0
    %1301 = vmatprep.subr.bf16.mxu0 0
    %1302 = vmatpush2.bf16.xpose.msra.mxu0 0
    %1303 = vmatprep.subr.bf16.mxu0 0
    %1304 = vmatpush2.bf16.xpose.msra.mxu0 0
    %1305 = vmatprep.subr.bf16.mxu0 0
    %1306 = vmatpush2.bf16.xpose.msra.mxu0 0
    %1307 = vmatprep.subr.bf16.mxu0 0
    %1308 = vmatpush2.bf16.xpose.msra.mxu0 0
    %1309 = vmatprep.subr.bf16.mxu0 0
    %1310 = vmatpush2.bf16.xpose.msra.mxu0 0
    %1311 = vmatprep.subr.bf16.mxu0 0
    %1312 = vmatpush2.bf16.xpose.msra.mxu0 0
    %1313 = vmatprep.subr.bf16.mxu0 0
    %1314 = vmatpush2.bf16.xpose.msra.mxu0 0
    %1315 = vmatprep.mubr.bf16.mxu0 0
    %1316 = vmatmul.mubr.bf16.gmra.mxu0 %v1158
    %v1317 = vpop.f32.mrf.mxu0
    %v1318 = vadd.f32 0.0, %v1317
    %v1319 = vpop.f32.mrf.mxu0
    %v1320 = vpop.f32.mrf.mxu0
    %v1321 = vpop.f32.mrf.mxu0
    %1322 = vdwg.mxu0
    %1323 = vmatprep.subr.bf16.mxu0 0
    %1324 = vmatpush1.bf16.xpose.msra.mxu0 0
    %1325 = vmatprep.subr.bf16.mxu0 0
    %1326 = vmatpush1.bf16.xpose.msra.mxu0 0
    %1327 = vmatprep.subr.bf16.mxu0 0
    %1328 = vmatpush1.bf16.xpose.msra.mxu0 0
    %1329 = vmatprep.subr.bf16.mxu0 0
    %1330 = vmatpush1.bf16.xpose.msra.mxu0 0
    %1331 = vmatprep.subr.bf16.mxu0 0
    %1332 = vmatpush1.bf16.xpose.msra.mxu0 0
    %1333 = vmatprep.subr.bf16.mxu0 0
    %1334 = vmatpush1.bf16.xpose.msra.mxu0 0
    %1335 = vmatprep.subr.bf16.mxu0 0
    %1336 = vmatpush1.bf16.xpose.msra.mxu0 0
    %1337 = vmatprep.subr.bf16.mxu0 0
    %1338 = vmatpush1.bf16.xpose.msra.mxu0 %v1093
    %1339 = vmatprep.subr.bf16.mxu0 0
    %1340 = vmatpush2.bf16.xpose.msra.mxu0 0
    %1341 = vmatprep.subr.bf16.mxu0 0
    %1342 = vmatpush2.bf16.xpose.msra.mxu0 0
    %1343 = vmatprep.subr.bf16.mxu0 0
    %1344 = vmatpush2.bf16.xpose.msra.mxu0 0
    %1345 = vmatprep.subr.bf16.mxu0 0
    %1346 = vmatpush2.bf16.xpose.msra.mxu0 0
    %1347 = vmatprep.subr.bf16.mxu0 0
    %1348 = vmatpush2.bf16.xpose.msra.mxu0 0
    %1349 = vmatprep.subr.bf16.mxu0 0
    %1350 = vmatpush2.bf16.xpose.msra.mxu0 0
    %1351 = vmatprep.subr.bf16.mxu0 0
    %1352 = vmatpush2.bf16.xpose.msra.mxu0 0
    %1353 = vmatprep.subr.bf16.mxu0 0
    %1354 = vmatpush2.bf16.xpose.msra.mxu0 0
    %1355 = vmatprep.mubr.bf16.mxu0 0
    %1356 = vmatmul.mubr.bf16.gmra.mxu0 %v1159
    %v1357 = vpop.f32.mrf.mxu0
    %v1358 = vadd.f32 0.0, %v1357
    %v1359 = vpop.f32.mrf.mxu0
    %v1360 = vpop.f32.mrf.mxu0
    %v1361 = vpop.f32.mrf.mxu0
    %1362 = vdwg.mxu0
    %1363 = vmatprep.subr.bf16.mxu0 0
    %1364 = vmatpush1.bf16.xpose.msra.mxu0 0
    %1365 = vmatprep.subr.bf16.mxu0 0
    %1366 = vmatpush1.bf16.xpose.msra.mxu0 0
    %1367 = vmatprep.subr.bf16.mxu0 0
    %1368 = vmatpush1.bf16.xpose.msra.mxu0 0
    %1369 = vmatprep.subr.bf16.mxu0 0
    %1370 = vmatpush1.bf16.xpose.msra.mxu0 0
    %1371 = vmatprep.subr.bf16.mxu0 0
    %1372 = vmatpush1.bf16.xpose.msra.mxu0 0
    %1373 = vmatprep.subr.bf16.mxu0 0
    %1374 = vmatpush1.bf16.xpose.msra.mxu0 0
    %1375 = vmatprep.subr.bf16.mxu0 0
    %1376 = vmatpush1.bf16.xpose.msra.mxu0 0
    %1377 = vmatprep.subr.bf16.mxu0 0
    %1378 = vmatpush1.bf16.xpose.msra.mxu0 %v1094
    %1379 = vmatprep.subr.bf16.mxu0 0
    %1380 = vmatpush2.bf16.xpose.msra.mxu0 0
    %1381 = vmatprep.subr.bf16.mxu0 0
    %1382 = vmatpush2.bf16.xpose.msra.mxu0 0
    %1383 = vmatprep.subr.bf16.mxu0 0
    %1384 = vmatpush2.bf16.xpose.msra.mxu0 0
    %1385 = vmatprep.subr.bf16.mxu0 0
    %1386 = vmatpush2.bf16.xpose.msra.mxu0 0
    %1387 = vmatprep.subr.bf16.mxu0 0
    %1388 = vmatpush2.bf16.xpose.msra.mxu0 0
    %1389 = vmatprep.subr.bf16.mxu0 0
    %1390 = vmatpush2.bf16.xpose.msra.mxu0 0
    %1391 = vmatprep.subr.bf16.mxu0 0
    %1392 = vmatpush2.bf16.xpose.msra.mxu0 0
    %1393 = vmatprep.subr.bf16.mxu0 0
    %1394 = vmatpush2.bf16.xpose.msra.mxu0 0
    %1395 = vmatprep.mubr.bf16.mxu0 0
    %1396 = vmatmul.mubr.bf16.gmra.mxu0 %v1160
    %v1397 = vpop.f32.mrf.mxu0
    %v1398 = vadd.f32 0.0, %v1397
    %v1399 = vpop.f32.mrf.mxu0
    %v1400 = vpop.f32.mrf.mxu0
    %v1401 = vpop.f32.mrf.mxu0
    %1402 = vdwg.mxu0
    %1403 = vmatprep.subr.bf16.mxu0 0
    %1404 = vmatpush1.bf16.xpose.msra.mxu0 0
    %1405 = vmatprep.subr.bf16.mxu0 0
    %1406 = vmatpush1.bf16.xpose.msra.mxu0 0
    %1407 = vmatprep.subr.bf16.mxu0 0
    %1408 = vmatpush1.bf16.xpose.msra.mxu0 0
    %1409 = vmatprep.subr.bf16.mxu0 0
    %1410 = vmatpush1.bf16.xpose.msra.mxu0 0
    %1411 = vmatprep.subr.bf16.mxu0 0
    %1412 = vmatpush1.bf16.xpose.msra.mxu0 0
    %1413 = vmatprep.subr.bf16.mxu0 0
    %1414 = vmatpush1.bf16.xpose.msra.mxu0 0
    %1415 = vmatprep.subr.bf16.mxu0 0
    %1416 = vmatpush1.bf16.xpose.msra.mxu0 0
    %1417 = vmatprep.subr.bf16.mxu0 0
    %1418 = vmatpush1.bf16.xpose.msra.mxu0 %v1095
    %1419 = vmatprep.subr.bf16.mxu0 0
    %1420 = vmatpush2.bf16.xpose.msra.mxu0 0
    %1421 = vmatprep.subr.bf16.mxu0 0
    %1422 = vmatpush2.bf16.xpose.msra.mxu0 0
    %1423 = vmatprep.subr.bf16.mxu0 0
    %1424 = vmatpush2.bf16.xpose.msra.mxu0 0
    %1425 = vmatprep.subr.bf16.mxu0 0
    %1426 = vmatpush2.bf16.xpose.msra.mxu0 0
    %1427 = vmatprep.subr.bf16.mxu0 0
    %1428 = vmatpush2.bf16.xpose.msra.mxu0 0
    %1429 = vmatprep.subr.bf16.mxu0 0
    %1430 = vmatpush2.bf16.xpose.msra.mxu0 0
    %1431 = vmatprep.subr.bf16.mxu0 0
    %1432 = vmatpush2.bf16.xpose.msra.mxu0 0
    %1433 = vmatprep.subr.bf16.mxu0 0
    %1434 = vmatpush2.bf16.xpose.msra.mxu0 0
    %1435 = vmatprep.mubr.bf16.mxu0 0
    %1436 = vmatmul.mubr.bf16.gmra.mxu0 %v1161
    %v1437 = vpop.f32.mrf.mxu0
    %v1438 = vadd.f32 0.0, %v1437
    %v1439 = vpop.f32.mrf.mxu0
    %v1440 = vpop.f32.mrf.mxu0
    %v1441 = vpop.f32.mrf.mxu0
    %1442 = vdwg.mxu0
    %1443 = vmatprep.subr.bf16.mxu0 0
    %1444 = vmatpush1.bf16.xpose.msra.mxu0 0
    %1445 = vmatprep.subr.bf16.mxu0 0
    %1446 = vmatpush1.bf16.xpose.msra.mxu0 0
    %1447 = vmatprep.subr.bf16.mxu0 0
    %1448 = vmatpush1.bf16.xpose.msra.mxu0 0
    %1449 = vmatprep.subr.bf16.mxu0 0
    %1450 = vmatpush1.bf16.xpose.msra.mxu0 0
    %1451 = vmatprep.subr.bf16.mxu0 0
    %1452 = vmatpush1.bf16.xpose.msra.mxu0 0
    %1453 = vmatprep.subr.bf16.mxu0 0
    %1454 = vmatpush1.bf16.xpose.msra.mxu0 0
    %1455 = vmatprep.subr.bf16.mxu0 0
    %1456 = vmatpush1.bf16.xpose.msra.mxu0 0
    %1457 = vmatprep.subr.bf16.mxu0 0
    %1458 = vmatpush1.bf16.xpose.msra.mxu0 %v1096
    %1459 = vmatprep.subr.bf16.mxu0 0
    %1460 = vmatpush2.bf16.xpose.msra.mxu0 0
    %1461 = vmatprep.subr.bf16.mxu0 0
    %1462 = vmatpush2.bf16.xpose.msra.mxu0 0
    %1463 = vmatprep.subr.bf16.mxu0 0
    %1464 = vmatpush2.bf16.xpose.msra.mxu0 0
    %1465 = vmatprep.subr.bf16.mxu0 0
    %1466 = vmatpush2.bf16.xpose.msra.mxu0 0
    %1467 = vmatprep.subr.bf16.mxu0 0
    %1468 = vmatpush2.bf16.xpose.msra.mxu0 0
    %1469 = vmatprep.subr.bf16.mxu0 0
    %1470 = vmatpush2.bf16.xpose.msra.mxu0 0
    %1471 = vmatprep.subr.bf16.mxu0 0
    %1472 = vmatpush2.bf16.xpose.msra.mxu0 0
    %1473 = vmatprep.subr.bf16.mxu0 0
    %1474 = vmatpush2.bf16.xpose.msra.mxu0 0
    %1475 = vmatprep.mubr.bf16.mxu0 0
    %1476 = vmatmul.mubr.bf16.gmra.mxu0 %v1162
    %v1477 = vpop.f32.mrf.mxu0
    %v1478 = vadd.f32 0.0, %v1477
    %v1479 = vpop.f32.mrf.mxu0
    %v1480 = vpop.f32.mrf.mxu0
    %v1481 = vpop.f32.mrf.mxu0
    %1482 = vdwg.mxu0
    %vm1483 = vcmask 57344
    %v1484 = vsel %vm1483, %v1198, -inf
    %1485 = vmax.xlane.f32.xlu0 %v1484
    %v1486 = vpop.xlane.xlu0 %1485
    %v1487 = vsel %vm1483, %v1238, -inf
    %1488 = vmax.xlane.f32.xlu0 %v1487
    %v1489 = vpop.xlane.xlu0 %1488
    %v1490 = vsel %vm1483, %v1278, -inf
    %1491 = vmax.xlane.f32.xlu0 %v1490
    %v1492 = vpop.xlane.xlu0 %1491
    %v1493 = vsel %vm1483, %v1318, -inf
    %1494 = vmax.xlane.f32.xlu0 %v1493
    %v1495 = vpop.xlane.xlu0 %1494
    %v1496 = vsel %vm1483, %v1358, -inf
    %1497 = vmax.xlane.f32.xlu0 %v1496
    %v1498 = vpop.xlane.xlu0 %1497
    %v1499 = vsel %vm1483, %v1398, -inf
    %1500 = vmax.xlane.f32.xlu0 %v1499
    %v1501 = vpop.xlane.xlu0 %1500
    %v1502 = vsel %vm1483, %v1438, -inf
    %1503 = vmax.xlane.f32.xlu0 %v1502
    %v1504 = vpop.xlane.xlu0 %1503
    %v1505 = vsel %vm1483, %v1478, -inf
    %1506 = vmax.xlane.f32.xlu0 %v1505
    %v1507 = vpop.xlane.xlu0 %1506
    %v1508 = vsub.f32 %v1198, %v1486
    %v1509 = vsub.f32 %v1238, %v1489
    %v1510 = vsub.f32 %v1278, %v1492
    %v1511 = vsub.f32 %v1318, %v1495
    %v1512 = vsub.f32 %v1358, %v1498
    %v1513 = vsub.f32 %v1398, %v1501
    %v1514 = vsub.f32 %v1438, %v1504
    %v1515 = vsub.f32 %v1478, %v1507
    %v1516 = vmul.f32 %v1508, 1.442695
    %v1517 = vpow.pop %v1516
    %v1518 = vmul.f32 %v1509, 1.442695
    %v1519 = vpow.pop %v1518
    %v1520 = vmul.f32 %v1510, 1.442695
    %v1521 = vpow.pop %v1520
    %v1522 = vmul.f32 %v1511, 1.442695
    %v1523 = vpow.pop %v1522
    %v1524 = vmul.f32 %v1512, 1.442695
    %v1525 = vpow.pop %v1524
    %v1526 = vmul.f32 %v1513, 1.442695
    %v1527 = vpow.pop %v1526
    %v1528 = vmul.f32 %v1514, 1.442695
    %v1529 = vpow.pop %v1528
    %v1530 = vmul.f32 %v1515, 1.442695
    %v1531 = vpow.pop %v1530
    %v1532 = vsel %vm1483, %v1517, 0.0
    %1533 = vadd.xlane.f32.xlu0 %v1532
    %v1534 = vpop.xlane.xlu0 %1533
    %v1535 = vsel %vm1483, %v1519, 0.0
    %1536 = vadd.xlane.f32.xlu0 %v1535
    %v1537 = vpop.xlane.xlu0 %1536
    %v1538 = vsel %vm1483, %v1521, 0.0
    %1539 = vadd.xlane.f32.xlu0 %v1538
    %v1540 = vpop.xlane.xlu0 %1539
    %v1541 = vsel %vm1483, %v1523, 0.0
    %1542 = vadd.xlane.f32.xlu0 %v1541
    %v1543 = vpop.xlane.xlu0 %1542
    %v1544 = vsel %vm1483, %v1525, 0.0
    %1545 = vadd.xlane.f32.xlu0 %v1544
    %v1546 = vpop.xlane.xlu0 %1545
    %v1547 = vsel %vm1483, %v1527, 0.0
    %1548 = vadd.xlane.f32.xlu0 %v1547
    %v1549 = vpop.xlane.xlu0 %1548
    %v1550 = vsel %vm1483, %v1529, 0.0
    %1551 = vadd.xlane.f32.xlu0 %v1550
    %v1552 = vpop.xlane.xlu0 %1551
    %v1553 = vsel %vm1483, %v1531, 0.0
    %1554 = vadd.xlane.f32.xlu0 %v1553
    %v1555 = vpop.xlane.xlu0 %1554
    %v1556 = vrcp.pop %v1534
    %v1557 = vrcp.pop %v1537
    %v1558 = vrcp.pop %v1540
    %v1559 = vrcp.pop %v1543
    %v1560 = vrcp.pop %v1546
    %v1561 = vrcp.pop %v1549
    %v1562 = vrcp.pop %v1552
    %v1563 = vrcp.pop %v1555
    %v1564 = vmul.f32 %v1517, %v1556
    %v1565 = vmul.f32 %v1519, %v1557
    %v1566 = vmul.f32 %v1521, %v1558
    %v1567 = vmul.f32 %v1523, %v1559
    %v1568 = vmul.f32 %v1525, %v1560
    %v1569 = vmul.f32 %v1527, %v1561
    %v1570 = vmul.f32 %v1529, %v1562
    %v1571 = vmul.f32 %v1531, %v1563
    %v1572 = vpack.c.bf16 %v1564, %v1564
    %v1573 = vpack.c.bf16 %v1565, %v1565
    %v1574 = vpack.c.bf16 %v1566, %v1566
    %v1575 = vpack.c.bf16 %v1567, %v1567
    %v1576 = vpack.c.bf16 %v1568, %v1568
    %v1577 = vpack.c.bf16 %v1569, %v1569
    %v1578 = vpack.c.bf16 %v1570, %v1570
    %v1579 = vpack.c.bf16 %v1571, %v1571
    %vm1580 = vcmask 64512
    %v1582 = vsel %vm1580, %v1572, 0
    %vm1584 = vcmask 1043456
    %v1586 = vsel %vm1584, %v1089, 0
    %1588 = vmatprep.subr.bf16.mxu0 0
    %1589 = vmatpush1.bf16.msra.mxu0 0
    %1590 = vmatprep.subr.bf16.mxu0 0
    %1591 = vmatpush1.bf16.msra.mxu0 0
    %1592 = vmatprep.subr.bf16.mxu0 0
    %1593 = vmatpush1.bf16.msra.mxu0 0
    %1594 = vmatprep.subr.bf16.mxu0 0
    %1595 = vmatpush1.bf16.msra.mxu0 0
    %1596 = vmatprep.subr.bf16.mxu0 0
    %1597 = vmatpush1.bf16.msra.mxu0 0
    %1598 = vmatprep.subr.bf16.mxu0 0
    %1599 = vmatpush1.bf16.msra.mxu0 0
    %1600 = vmatprep.subr.bf16.mxu0 0
    %1601 = vmatpush1.bf16.msra.mxu0 0
    %1602 = vmatprep.subr.bf16.mxu0 0
    %1603 = vmatpush1.bf16.msra.mxu0 %v1586
    %1604 = vmatprep.subr.bf16.mxu0 0
    %1605 = vmatpush2.bf16.msra.mxu0 0
    %1606 = vmatprep.subr.bf16.mxu0 0
    %1607 = vmatpush2.bf16.msra.mxu0 0
    %1608 = vmatprep.subr.bf16.mxu0 0
    %1609 = vmatpush2.bf16.msra.mxu0 0
    %1610 = vmatprep.subr.bf16.mxu0 0
    %1611 = vmatpush2.bf16.msra.mxu0 0
    %1612 = vmatprep.subr.bf16.mxu0 0
    %1613 = vmatpush2.bf16.msra.mxu0 0
    %1614 = vmatprep.subr.bf16.mxu0 0
    %1615 = vmatpush2.bf16.msra.mxu0 0
    %1616 = vmatprep.subr.bf16.mxu0 0
    %1617 = vmatpush2.bf16.msra.mxu0 0
    %1618 = vmatprep.subr.bf16.mxu0 0
    %1619 = vmatpush2.bf16.msra.mxu0 0
    %1620 = vmatprep.mubr.bf16.mxu0 0
    %1621 = vmatmul.mubr.bf16.gmra.mxu0 %v1582
    %v1622 = vpop.f32.mrf.mxu0
    %v1623 = vadd.f32 0.0, %v1622
    %v1624 = vpop.f32.mrf.mxu0
    %v1625 = vpop.f32.mrf.mxu0
    %v1626 = vpop.f32.mrf.mxu0
    %1627 = vdwg.mxu0
    %v1629 = vsel %vm1580, %v1573, 0
    %v1632 = vsel %vm1584, %v1090, 0
    %1634 = vmatprep.subr.bf16.mxu0 0
    %1635 = vmatpush1.bf16.msra.mxu0 0
    %1636 = vmatprep.subr.bf16.mxu0 0
    %1637 = vmatpush1.bf16.msra.mxu0 0
    %1638 = vmatprep.subr.bf16.mxu0 0
    %1639 = vmatpush1.bf16.msra.mxu0 0
    %1640 = vmatprep.subr.bf16.mxu0 0
    %1641 = vmatpush1.bf16.msra.mxu0 0
    %1642 = vmatprep.subr.bf16.mxu0 0
    %1643 = vmatpush1.bf16.msra.mxu0 0
    %1644 = vmatprep.subr.bf16.mxu0 0
    %1645 = vmatpush1.bf16.msra.mxu0 0
    %1646 = vmatprep.subr.bf16.mxu0 0
    %1647 = vmatpush1.bf16.msra.mxu0 0
    %1648 = vmatprep.subr.bf16.mxu0 0
    %1649 = vmatpush1.bf16.msra.mxu0 %v1632
    %1650 = vmatprep.subr.bf16.mxu0 0
    %1651 = vmatpush2.bf16.msra.mxu0 0
    %1652 = vmatprep.subr.bf16.mxu0 0
    %1653 = vmatpush2.bf16.msra.mxu0 0
    %1654 = vmatprep.subr.bf16.mxu0 0
    %1655 = vmatpush2.bf16.msra.mxu0 0
    %1656 = vmatprep.subr.bf16.mxu0 0
    %1657 = vmatpush2.bf16.msra.mxu0 0
    %1658 = vmatprep.subr.bf16.mxu0 0
    %1659 = vmatpush2.bf16.msra.mxu0 0
    %1660 = vmatprep.subr.bf16.mxu0 0
    %1661 = vmatpush2.bf16.msra.mxu0 0
    %1662 = vmatprep.subr.bf16.mxu0 0
    %1663 = vmatpush2.bf16.msra.mxu0 0
    %1664 = vmatprep.subr.bf16.mxu0 0
    %1665 = vmatpush2.bf16.msra.mxu0 0
    %1666 = vmatprep.mubr.bf16.mxu0 0
    %1667 = vmatmul.mubr.bf16.gmra.mxu0 %v1629
    %v1668 = vpop.f32.mrf.mxu0
    %v1669 = vadd.f32 0.0, %v1668
    %v1670 = vpop.f32.mrf.mxu0
    %v1671 = vpop.f32.mrf.mxu0
    %v1672 = vpop.f32.mrf.mxu0
    %1673 = vdwg.mxu0
    %v1675 = vsel %vm1580, %v1574, 0
    %v1678 = vsel %vm1584, %v1091, 0
    %1680 = vmatprep.subr.bf16.mxu0 0
    %1681 = vmatpush1.bf16.msra.mxu0 0
    %1682 = vmatprep.subr.bf16.mxu0 0
    %1683 = vmatpush1.bf16.msra.mxu0 0
    %1684 = vmatprep.subr.bf16.mxu0 0
    %1685 = vmatpush1.bf16.msra.mxu0 0
    %1686 = vmatprep.subr.bf16.mxu0 0
    %1687 = vmatpush1.bf16.msra.mxu0 0
    %1688 = vmatprep.subr.bf16.mxu0 0
    %1689 = vmatpush1.bf16.msra.mxu0 0
    %1690 = vmatprep.subr.bf16.mxu0 0
    %1691 = vmatpush1.bf16.msra.mxu0 0
    %1692 = vmatprep.subr.bf16.mxu0 0
    %1693 = vmatpush1.bf16.msra.mxu0 0
    %1694 = vmatprep.subr.bf16.mxu0 0
    %1695 = vmatpush1.bf16.msra.mxu0 %v1678
    %1696 = vmatprep.subr.bf16.mxu0 0
    %1697 = vmatpush2.bf16.msra.mxu0 0
    %1698 = vmatprep.subr.bf16.mxu0 0
    %1699 = vmatpush2.bf16.msra.mxu0 0
    %1700 = vmatprep.subr.bf16.mxu0 0
    %1701 = vmatpush2.bf16.msra.mxu0 0
    %1702 = vmatprep.subr.bf16.mxu0 0
    %1703 = vmatpush2.bf16.msra.mxu0 0
    %1704 = vmatprep.subr.bf16.mxu0 0
    %1705 = vmatpush2.bf16.msra.mxu0 0
    %1706 = vmatprep.subr.bf16.mxu0 0
    %1707 = vmatpush2.bf16.msra.mxu0 0
    %1708 = vmatprep.subr.bf16.mxu0 0
    %1709 = vmatpush2.bf16.msra.mxu0 0
    %1710 = vmatprep.subr.bf16.mxu0 0
    %1711 = vmatpush2.bf16.msra.mxu0 0
    %1712 = vmatprep.mubr.bf16.mxu0 0
    %1713 = vmatmul.mubr.bf16.gmra.mxu0 %v1675
    %v1714 = vpop.f32.mrf.mxu0
    %v1715 = vadd.f32 0.0, %v1714
    %v1716 = vpop.f32.mrf.mxu0
    %v1717 = vpop.f32.mrf.mxu0
    %v1718 = vpop.f32.mrf.mxu0
    %1719 = vdwg.mxu0
    %v1721 = vsel %vm1580, %v1575, 0
    %v1724 = vsel %vm1584, %v1092, 0
    %1726 = vmatprep.subr.bf16.mxu0 0
    %1727 = vmatpush1.bf16.msra.mxu0 0
    %1728 = vmatprep.subr.bf16.mxu0 0
    %1729 = vmatpush1.bf16.msra.mxu0 0
    %1730 = vmatprep.subr.bf16.mxu0 0
    %1731 = vmatpush1.bf16.msra.mxu0 0
    %1732 = vmatprep.subr.bf16.mxu0 0
    %1733 = vmatpush1.bf16.msra.mxu0 0
    %1734 = vmatprep.subr.bf16.mxu0 0
    %1735 = vmatpush1.bf16.msra.mxu0 0
    %1736 = vmatprep.subr.bf16.mxu0 0
    %1737 = vmatpush1.bf16.msra.mxu0 0
    %1738 = vmatprep.subr.bf16.mxu0 0
    %1739 = vmatpush1.bf16.msra.mxu0 0
    %1740 = vmatprep.subr.bf16.mxu0 0
    %1741 = vmatpush1.bf16.msra.mxu0 %v1724
    %1742 = vmatprep.subr.bf16.mxu0 0
    %1743 = vmatpush2.bf16.msra.mxu0 0
    %1744 = vmatprep.subr.bf16.mxu0 0
    %1745 = vmatpush2.bf16.msra.mxu0 0
    %1746 = vmatprep.subr.bf16.mxu0 0
    %1747 = vmatpush2.bf16.msra.mxu0 0
    %1748 = vmatprep.subr.bf16.mxu0 0
    %1749 = vmatpush2.bf16.msra.mxu0 0
    %1750 = vmatprep.subr.bf16.mxu0 0
    %1751 = vmatpush2.bf16.msra.mxu0 0
    %1752 = vmatprep.subr.bf16.mxu0 0
    %1753 = vmatpush2.bf16.msra.mxu0 0
    %1754 = vmatprep.subr.bf16.mxu0 0
    %1755 = vmatpush2.bf16.msra.mxu0 0
    %1756 = vmatprep.subr.bf16.mxu0 0
    %1757 = vmatpush2.bf16.msra.mxu0 0
    %1758 = vmatprep.mubr.bf16.mxu0 0
    %1759 = vmatmul.mubr.bf16.gmra.mxu0 %v1721
    %v1760 = vpop.f32.mrf.mxu0
    %v1761 = vadd.f32 0.0, %v1760
    %v1762 = vpop.f32.mrf.mxu0
    %v1763 = vpop.f32.mrf.mxu0
    %v1764 = vpop.f32.mrf.mxu0
    %1765 = vdwg.mxu0
    %v1767 = vsel %vm1580, %v1576, 0
    %v1770 = vsel %vm1584, %v1093, 0
    %1772 = vmatprep.subr.bf16.mxu0 0
    %1773 = vmatpush1.bf16.msra.mxu0 0
    %1774 = vmatprep.subr.bf16.mxu0 0
    %1775 = vmatpush1.bf16.msra.mxu0 0
    %1776 = vmatprep.subr.bf16.mxu0 0
    %1777 = vmatpush1.bf16.msra.mxu0 0
    %1778 = vmatprep.subr.bf16.mxu0 0
    %1779 = vmatpush1.bf16.msra.mxu0 0
    %1780 = vmatprep.subr.bf16.mxu0 0
    %1781 = vmatpush1.bf16.msra.mxu0 0
    %1782 = vmatprep.subr.bf16.mxu0 0
    %1783 = vmatpush1.bf16.msra.mxu0 0
    %1784 = vmatprep.subr.bf16.mxu0 0
    %1785 = vmatpush1.bf16.msra.mxu0 0
    %1786 = vmatprep.subr.bf16.mxu0 0
    %1787 = vmatpush1.bf16.msra.mxu0 %v1770
    %1788 = vmatprep.subr.bf16.mxu0 0
    %1789 = vmatpush2.bf16.msra.mxu0 0
    %1790 = vmatprep.subr.bf16.mxu0 0
    %1791 = vmatpush2.bf16.msra.mxu0 0
    %1792 = vmatprep.subr.bf16.mxu0 0
    %1793 = vmatpush2.bf16.msra.mxu0 0
    %1794 = vmatprep.subr.bf16.mxu0 0
    %1795 = vmatpush2.bf16.msra.mxu0 0
    %1796 = vmatprep.subr.bf16.mxu0 0
    %1797 = vmatpush2.bf16.msra.mxu0 0
    %1798 = vmatprep.subr.bf16.mxu0 0
    %1799 = vmatpush2.bf16.msra.mxu0 0
    %1800 = vmatprep.subr.bf16.mxu0 0
    %1801 = vmatpush2.bf16.msra.mxu0 0
    %1802 = vmatprep.subr.bf16.mxu0 0
    %1803 = vmatpush2.bf16.msra.mxu0 0
    %1804 = vmatprep.mubr.bf16.mxu0 0
    %1805 = vmatmul.mubr.bf16.gmra.mxu0 %v1767
    %v1806 = vpop.f32.mrf.mxu0
    %v1807 = vadd.f32 0.0, %v1806
    %v1808 = vpop.f32.mrf.mxu0
    %v1809 = vpop.f32.mrf.mxu0
    %v1810 = vpop.f32.mrf.mxu0
    %1811 = vdwg.mxu0
    %v1813 = vsel %vm1580, %v1577, 0
    %v1816 = vsel %vm1584, %v1094, 0
    %1818 = vmatprep.subr.bf16.mxu0 0
    %1819 = vmatpush1.bf16.msra.mxu0 0
    %1820 = vmatprep.subr.bf16.mxu0 0
    %1821 = vmatpush1.bf16.msra.mxu0 0
    %1822 = vmatprep.subr.bf16.mxu0 0
    %1823 = vmatpush1.bf16.msra.mxu0 0
    %1824 = vmatprep.subr.bf16.mxu0 0
    %1825 = vmatpush1.bf16.msra.mxu0 0
    %1826 = vmatprep.subr.bf16.mxu0 0
    %1827 = vmatpush1.bf16.msra.mxu0 0
    %1828 = vmatprep.subr.bf16.mxu0 0
    %1829 = vmatpush1.bf16.msra.mxu0 0
    %1830 = vmatprep.subr.bf16.mxu0 0
    %1831 = vmatpush1.bf16.msra.mxu0 0
    %1832 = vmatprep.subr.bf16.mxu0 0
    %1833 = vmatpush1.bf16.msra.mxu0 %v1816
    %1834 = vmatprep.subr.bf16.mxu0 0
    %1835 = vmatpush2.bf16.msra.mxu0 0
    %1836 = vmatprep.subr.bf16.mxu0 0
    %1837 = vmatpush2.bf16.msra.mxu0 0
    %1838 = vmatprep.subr.bf16.mxu0 0
    %1839 = vmatpush2.bf16.msra.mxu0 0
    %1840 = vmatprep.subr.bf16.mxu0 0
    %1841 = vmatpush2.bf16.msra.mxu0 0
    %1842 = vmatprep.subr.bf16.mxu0 0
    %1843 = vmatpush2.bf16.msra.mxu0 0
    %1844 = vmatprep.subr.bf16.mxu0 0
    %1845 = vmatpush2.bf16.msra.mxu0 0
    %1846 = vmatprep.subr.bf16.mxu0 0
    %1847 = vmatpush2.bf16.msra.mxu0 0
    %1848 = vmatprep.subr.bf16.mxu0 0
    %1849 = vmatpush2.bf16.msra.mxu0 0
    %1850 = vmatprep.mubr.bf16.mxu0 0
    %1851 = vmatmul.mubr.bf16.gmra.mxu0 %v1813
    %v1852 = vpop.f32.mrf.mxu0
    %v1853 = vadd.f32 0.0, %v1852
    %v1854 = vpop.f32.mrf.mxu0
    %v1855 = vpop.f32.mrf.mxu0
    %v1856 = vpop.f32.mrf.mxu0
    %1857 = vdwg.mxu0
    %v1859 = vsel %vm1580, %v1578, 0
    %v1862 = vsel %vm1584, %v1095, 0
    %1864 = vmatprep.subr.bf16.mxu0 0
    %1865 = vmatpush1.bf16.msra.mxu0 0
    %1866 = vmatprep.subr.bf16.mxu0 0
    %1867 = vmatpush1.bf16.msra.mxu0 0
    %1868 = vmatprep.subr.bf16.mxu0 0
    %1869 = vmatpush1.bf16.msra.mxu0 0
    %1870 = vmatprep.subr.bf16.mxu0 0
    %1871 = vmatpush1.bf16.msra.mxu0 0
    %1872 = vmatprep.subr.bf16.mxu0 0
    %1873 = vmatpush1.bf16.msra.mxu0 0
    %1874 = vmatprep.subr.bf16.mxu0 0
    %1875 = vmatpush1.bf16.msra.mxu0 0
    %1876 = vmatprep.subr.bf16.mxu0 0
    %1877 = vmatpush1.bf16.msra.mxu0 0
    %1878 = vmatprep.subr.bf16.mxu0 0
    %1879 = vmatpush1.bf16.msra.mxu0 %v1862
    %1880 = vmatprep.subr.bf16.mxu0 0
    %1881 = vmatpush2.bf16.msra.mxu0 0
    %1882 = vmatprep.subr.bf16.mxu0 0
    %1883 = vmatpush2.bf16.msra.mxu0 0
    %1884 = vmatprep.subr.bf16.mxu0 0
    %1885 = vmatpush2.bf16.msra.mxu0 0
    %1886 = vmatprep.subr.bf16.mxu0 0
    %1887 = vmatpush2.bf16.msra.mxu0 0
    %1888 = vmatprep.subr.bf16.mxu0 0
    %1889 = vmatpush2.bf16.msra.mxu0 0
    %1890 = vmatprep.subr.bf16.mxu0 0
    %1891 = vmatpush2.bf16.msra.mxu0 0
    %1892 = vmatprep.subr.bf16.mxu0 0
    %1893 = vmatpush2.bf16.msra.mxu0 0
    %1894 = vmatprep.subr.bf16.mxu0 0
    %1895 = vmatpush2.bf16.msra.mxu0 0
    %1896 = vmatprep.mubr.bf16.mxu0 0
    %1897 = vmatmul.mubr.bf16.gmra.mxu0 %v1859
    %v1898 = vpop.f32.mrf.mxu0
    %v1899 = vadd.f32 0.0, %v1898
    %v1900 = vpop.f32.mrf.mxu0
    %v1901 = vpop.f32.mrf.mxu0
    %v1902 = vpop.f32.mrf.mxu0
    %1903 = vdwg.mxu0
    %v1905 = vsel %vm1580, %v1579, 0
    %v1908 = vsel %vm1584, %v1096, 0
    %1910 = vmatprep.subr.bf16.mxu0 0
    %1911 = vmatpush1.bf16.msra.mxu0 0
    %1912 = vmatprep.subr.bf16.mxu0 0
    %1913 = vmatpush1.bf16.msra.mxu0 0
    %1914 = vmatprep.subr.bf16.mxu0 0
    %1915 = vmatpush1.bf16.msra.mxu0 0
    %1916 = vmatprep.subr.bf16.mxu0 0
    %1917 = vmatpush1.bf16.msra.mxu0 0
    %1918 = vmatprep.subr.bf16.mxu0 0
    %1919 = vmatpush1.bf16.msra.mxu0 0
    %1920 = vmatprep.subr.bf16.mxu0 0
    %1921 = vmatpush1.bf16.msra.mxu0 0
    %1922 = vmatprep.subr.bf16.mxu0 0
    %1923 = vmatpush1.bf16.msra.mxu0 0
    %1924 = vmatprep.subr.bf16.mxu0 0
    %1925 = vmatpush1.bf16.msra.mxu0 %v1908
    %1926 = vmatprep.subr.bf16.mxu0 0
    %1927 = vmatpush2.bf16.msra.mxu0 0
    %1928 = vmatprep.subr.bf16.mxu0 0
    %1929 = vmatpush2.bf16.msra.mxu0 0
    %1930 = vmatprep.subr.bf16.mxu0 0
    %1931 = vmatpush2.bf16.msra.mxu0 0
    %1932 = vmatprep.subr.bf16.mxu0 0
    %1933 = vmatpush2.bf16.msra.mxu0 0
    %1934 = vmatprep.subr.bf16.mxu0 0
    %1935 = vmatpush2.bf16.msra.mxu0 0
    %1936 = vmatprep.subr.bf16.mxu0 0
    %1937 = vmatpush2.bf16.msra.mxu0 0
    %1938 = vmatprep.subr.bf16.mxu0 0
    %1939 = vmatpush2.bf16.msra.mxu0 0
    %1940 = vmatprep.subr.bf16.mxu0 0
    %1941 = vmatpush2.bf16.msra.mxu0 0
    %1942 = vmatprep.mubr.bf16.mxu0 0
    %1943 = vmatmul.mubr.bf16.gmra.mxu0 %v1905
    %v1944 = vpop.f32.mrf.mxu0
    %v1945 = vadd.f32 0.0, %v1944
    %v1946 = vpop.f32.mrf.mxu0
    %v1947 = vpop.f32.mrf.mxu0
    %v1948 = vpop.f32.mrf.mxu0
    %1949 = vdwg.mxu0
    %v1950 = vpack.c.bf16 %v1088, %v1088
    %v1951 = vld [vmem:[#allocation6] sm:$0xf]
    %v1952 = vld [vmem:[#allocation6 + $0x4] sm:$0xf]
    %v1953 = vld [vmem:[#allocation6 + $0x8] sm:$0xf]
    %v1954 = vld [vmem:[#allocation6 + $0xc] sm:$0xf]
    %v1955 = vld [vmem:[#allocation6 + $0x10] sm:$0xf]
    %v1956 = vld [vmem:[#allocation6 + $0x14] sm:$0xf]
    %v1957 = vld [vmem:[#allocation6 + $0x18] sm:$0xf]
    %v1958 = vld [vmem:[#allocation6 + $0x1c] sm:$0xf]
    %v1959 = vld [vmem:[#allocation6 + $0x20] sm:$0xf]
    %v1960 = vld [vmem:[#allocation6 + $0x24] sm:$0xf]
    %v1961 = vld [vmem:[#allocation6 + $0x28] sm:$0xf]
    %v1962 = vld [vmem:[#allocation6 + $0x2c] sm:$0xf]
    %v1963 = vld [vmem:[#allocation6 + $0x30] sm:$0xf]
    %v1964 = vld [vmem:[#allocation6 + $0x34] sm:$0xf]
    %v1965 = vld [vmem:[#allocation6 + $0x38] sm:$0xf]
    %v1966 = vld [vmem:[#allocation6 + $0x3c] sm:$0xf]
    %v1967 = vpack.c.bf16 %v1623, %v1623
    %v1968 = vpack.c.bf16 %v1669, %v1669
    %v1969 = vpack.c.bf16 %v1715, %v1715
    %v1970 = vpack.c.bf16 %v1761, %v1761
    %v1971 = vpack.c.bf16 %v1807, %v1807
    %v1972 = vpack.c.bf16 %v1853, %v1853
    %v1973 = vpack.c.bf16 %v1899, %v1899
    %v1974 = vpack.c.bf16 %v1945, %v1945
    %s1975 = scalar_lea.vmem [#allocation6], 64
    %v1976 = vld [vmem:[%s1975] sm:$0xf]
    %v1977 = vld [vmem:[%s1975 + $0x4] sm:$0xf]
    %v1978 = vld [vmem:[%s1975 + $0x8] sm:$0xf]
    %v1979 = vld [vmem:[%s1975 + $0xc] sm:$0xf]
    %v1980 = vld [vmem:[%s1975 + $0x10] sm:$0xf]
    %v1981 = vld [vmem:[%s1975 + $0x14] sm:$0xf]
    %v1982 = vld [vmem:[%s1975 + $0x18] sm:$0xf]
    %v1983 = vld [vmem:[%s1975 + $0x1c] sm:$0xf]
    %v1984 = vld [vmem:[%s1975 + $0x20] sm:$0xf]
    %v1985 = vld [vmem:[%s1975 + $0x24] sm:$0xf]
    %v1986 = vld [vmem:[%s1975 + $0x28] sm:$0xf]
    %v1987 = vld [vmem:[%s1975 + $0x2c] sm:$0xf]
    %v1988 = vld [vmem:[%s1975 + $0x30] sm:$0xf]
    %v1989 = vld [vmem:[%s1975 + $0x34] sm:$0xf]
    %v1990 = vld [vmem:[%s1975 + $0x38] sm:$0xf]
    %v1991 = vld [vmem:[%s1975 + $0x3c] sm:$0xf]
    %v2000 = vunpack.c.l.b16 %v1967
    %v2001 = vunpack.c.l.b16 %v1968
    %v2002 = vunpack.c.l.b16 %v1969
    %v2003 = vunpack.c.l.b16 %v1970
    %v2004 = vunpack.c.l.b16 %v1971
    %v2005 = vunpack.c.l.b16 %v1972
    %v2006 = vunpack.c.l.b16 %v1973
    %v2007 = vunpack.c.l.b16 %v1974
    %v2008 = vrot.slane %v2001, 7
    %vm2009 = vcmask 1041409
    %v2010 = vsel %vm2009, %v2008, %v2000
    %v2011 = vrot.slane %v2002, 6
    %vm2012 = vcmask 1042434
    %v2013 = vsel %vm2012, %v2011, %v2010
    %v2014 = vrot.slane %v2003, 5
    %vm2015 = vcmask 1043459
    %v2016 = vsel %vm2015, %v2014, %v2013
    %v2017 = vrot.slane %v2004, 4
    %vm2018 = vcmask 1044484
    %v2019 = vsel %vm2018, %v2017, %v2016
    %v2020 = vrot.slane %v2005, 3
    %vm2021 = vcmask 1045509
    %v2022 = vsel %vm2021, %v2020, %v2019
    %v2023 = vrot.slane %v2006, 2
    %vm2024 = vcmask 1046534
    %v2025 = vsel %vm2024, %v2023, %v2022
    %v2026 = vrot.slane %v2007, 1
    %vm2027 = vcmask 1047559
    %v2028 = vsel %vm2027, %v2026, %v2025
    %v2029 = vpack.c.b16 %v2028, %v2028
    %v2047 = vunpack.c.l.b16 %v1976
    %v2048 = vunpack.c.l.b16 %v1977
    %v2049 = vunpack.c.l.b16 %v1978
    %v2050 = vunpack.c.l.b16 %v1979
    %v2051 = vunpack.c.l.b16 %v1980
    %v2052 = vunpack.c.l.b16 %v1981
    %v2053 = vunpack.c.l.b16 %v1982
    %v2054 = vunpack.c.l.b16 %v1983
    %v2055 = vunpack.c.l.b16 %v1984
    %v2056 = vunpack.c.l.b16 %v1985
    %v2057 = vunpack.c.l.b16 %v1986
    %v2058 = vunpack.c.l.b16 %v1987
    %v2059 = vunpack.c.l.b16 %v1988
    %v2060 = vunpack.c.l.b16 %v1989
    %v2061 = vunpack.c.l.b16 %v1990
    %v2062 = vunpack.c.l.b16 %v1991
    %v2063 = vpack.c.b16 %v2048, %v2047
    %v2064 = vpack.c.b16 %v2050, %v2049
    %v2065 = vpack.c.b16 %v2052, %v2051
    %v2066 = vpack.c.b16 %v2054, %v2053
    %v2067 = vpack.c.b16 %v2056, %v2055
    %v2068 = vpack.c.b16 %v2058, %v2057
    %v2069 = vpack.c.b16 %v2060, %v2059
    %v2070 = vpack.c.b16 %v2062, %v2061
    %2079 = vmatprep.subr.bf16.mxu0 0
    %2080 = vmatpush1.bf16.msra.mxu0 %v2070
    %2081 = vmatprep.subr.bf16.mxu0 0
    %2082 = vmatpush1.bf16.msra.mxu0 %v2069
    %2083 = vmatprep.subr.bf16.mxu0 0
    %2084 = vmatpush1.bf16.msra.mxu0 %v2068
    %2085 = vmatprep.subr.bf16.mxu0 0
    %2086 = vmatpush1.bf16.msra.mxu0 %v2067
    %2087 = vmatprep.subr.bf16.mxu0 0
    %2088 = vmatpush1.bf16.msra.mxu0 %v2066
    %2089 = vmatprep.subr.bf16.mxu0 0
    %2090 = vmatpush1.bf16.msra.mxu0 %v2065
    %2091 = vmatprep.subr.bf16.mxu0 0
    %2092 = vmatpush1.bf16.msra.mxu0 %v2064
    %2093 = vmatprep.subr.bf16.mxu0 0
    %2094 = vmatpush1.bf16.msra.mxu0 %v2063
    %2095 = vmatprep.subr.bf16.mxu0 0
    %2096 = vmatpush2.bf16.msra.mxu0 0
    %2097 = vmatprep.subr.bf16.mxu0 0
    %2098 = vmatpush2.bf16.msra.mxu0 0
    %2099 = vmatprep.subr.bf16.mxu0 0
    %2100 = vmatpush2.bf16.msra.mxu0 0
    %2101 = vmatprep.subr.bf16.mxu0 0
    %2102 = vmatpush2.bf16.msra.mxu0 0
    %2103 = vmatprep.subr.bf16.mxu0 0
    %2104 = vmatpush2.bf16.msra.mxu0 0
    %2105 = vmatprep.subr.bf16.mxu0 0
    %2106 = vmatpush2.bf16.msra.mxu0 0
    %2107 = vmatprep.subr.bf16.mxu0 0
    %2108 = vmatpush2.bf16.msra.mxu0 0
    %2109 = vmatprep.subr.bf16.mxu0 0
    %2110 = vmatpush2.bf16.msra.mxu0 0
    %2111 = vmatprep.mubr.bf16.mxu0 0
    %2112 = vmatmul.mubr.bf16.gmra.mxu0 %v2029
    %v2113 = vpop.f32.mrf.mxu0
    %v2114 = vadd.f32 0.0, %v2113
    %v2115 = vpop.f32.mrf.mxu0
    %v2116 = vpop.f32.mrf.mxu0
    %v2117 = vpop.f32.mrf.mxu0
    %2118 = vdwg.mxu0
    %v2135 = vunpack.c.l.b16 %v1951
    %v2136 = vunpack.c.l.b16 %v1952
    %v2137 = vunpack.c.l.b16 %v1953
    %v2138 = vunpack.c.l.b16 %v1954
    %v2139 = vunpack.c.l.b16 %v1955
    %v2140 = vunpack.c.l.b16 %v1956
    %v2141 = vunpack.c.l.b16 %v1957
    %v2142 = vunpack.c.l.b16 %v1958
    %v2143 = vunpack.c.l.b16 %v1959
    %v2144 = vunpack.c.l.b16 %v1960
    %v2145 = vunpack.c.l.b16 %v1961
    %v2146 = vunpack.c.l.b16 %v1962
    %v2147 = vunpack.c.l.b16 %v1963
    %v2148 = vunpack.c.l.b16 %v1964
    %v2149 = vunpack.c.l.b16 %v1965
    %v2150 = vunpack.c.l.b16 %v1966
    %v2151 = vpack.c.b16 %v2136, %v2135
    %v2152 = vpack.c.b16 %v2138, %v2137
    %v2153 = vpack.c.b16 %v2140, %v2139
    %v2154 = vpack.c.b16 %v2142, %v2141
    %v2155 = vpack.c.b16 %v2144, %v2143
    %v2156 = vpack.c.b16 %v2146, %v2145
    %v2157 = vpack.c.b16 %v2148, %v2147
    %v2158 = vpack.c.b16 %v2150, %v2149
    %2167 = vmatprep.subr.bf16.mxu0 0
    %2168 = vmatpush1.bf16.msra.mxu0 %v2158
    %2169 = vmatprep.subr.bf16.mxu0 0
    %2170 = vmatpush1.bf16.msra.mxu0 %v2157
    %2171 = vmatprep.subr.bf16.mxu0 0
    %2172 = vmatpush1.bf16.msra.mxu0 %v2156
    %2173 = vmatprep.subr.bf16.mxu0 0
    %2174 = vmatpush1.bf16.msra.mxu0 %v2155
    %2175 = vmatprep.subr.bf16.mxu0 0
    %2176 = vmatpush1.bf16.msra.mxu0 %v2154
    %2177 = vmatprep.subr.bf16.mxu0 0
    %2178 = vmatpush1.bf16.msra.mxu0 %v2153
    %2179 = vmatprep.subr.bf16.mxu0 0
    %2180 = vmatpush1.bf16.msra.mxu0 %v2152
    %2181 = vmatprep.subr.bf16.mxu0 0
    %2182 = vmatpush1.bf16.msra.mxu0 %v2151
    %2183 = vmatprep.subr.bf16.mxu0 0
    %2184 = vmatpush2.bf16.msra.mxu0 0
    %2185 = vmatprep.subr.bf16.mxu0 0
    %2186 = vmatpush2.bf16.msra.mxu0 0
    %2187 = vmatprep.subr.bf16.mxu0 0
    %2188 = vmatpush2.bf16.msra.mxu0 0
    %2189 = vmatprep.subr.bf16.mxu0 0
    %2190 = vmatpush2.bf16.msra.mxu0 0
    %2191 = vmatprep.subr.bf16.mxu0 0
    %2192 = vmatpush2.bf16.msra.mxu0 0
    %2193 = vmatprep.subr.bf16.mxu0 0
    %2194 = vmatpush2.bf16.msra.mxu0 0
    %2195 = vmatprep.subr.bf16.mxu0 0
    %2196 = vmatpush2.bf16.msra.mxu0 0
    %2197 = vmatprep.subr.bf16.mxu0 0
    %2198 = vmatpush2.bf16.msra.mxu0 0
    %2199 = vmatprep.mubr.bf16.mxu0 0
    %2200 = vmatmul.mubr.bf16.gmra.mxu0 %v1950
    %v2201 = vpop.f32.mrf.mxu0
    %v2202 = vadd.f32 %v2114, %v2201
    %v2203 = vpop.f32.mrf.mxu0
    %v2204 = vpop.f32.mrf.mxu0
    %v2205 = vpop.f32.mrf.mxu0
    %2206 = vdwg.mxu0
    %v2207 = vld [vmem:[%s8] sm:$0x1]
    %v2209 = vlaneseq
    %v2210 = vshrl.u32 %v2209, 7
    %v2211 = vsub.s32 0, %v2210
    %v2212 = vrot.slane %v2207, %v2211
    %v2214 = vadd.f32 %v2202, %v2212
    %v2215 = vtanh.pop %v2214
    %v2216 = vpack.c.bf16 %v2215, %v2215
    %2217 = vst [vmem:[%s9] sm:$0xf] %v2216
    // Predicated region
    $region50: #{luong_attn_decoder_step.2} parent=1 // pred_check
      _
    $region51: #{luong_attn_decoder_step.2} parent=1 // pred_check_branch
      %2219 = sbr.rel (0) target = $region53
    $region52: #{luong_attn_decoder_step.2} parent=1 // pred_region
      _
    $region53: #{luong_attn_decoder_step.2} parent=1 // pred_fallthru
      _
    // Predicated region
    $region54: #{luong_attn_decoder_step.2} parent=1 // pred_check
      _
    $region55: #{luong_attn_decoder_step.2} parent=1 // pred_check_branch
      %2221 = sbr.rel (0) target = $region57
    $region56: #{luong_attn_decoder_step.2} parent=1 // pred_region
      _
    $region57: #{luong_attn_decoder_step.2} parent=1 // pred_fallthru
      _
    // Predicated region
    $region58: #{luong_attn_decoder_step.2} parent=1 // pred_check
      _
    $region59: #{luong_attn_decoder_step.2} parent=1 // pred_check_branch
      %2223 = sbr.rel (0) target = $region61
    $region60: #{luong_attn_decoder_step.2} parent=1 // pred_region
      _
    $region61: #{luong_attn_decoder_step.2} parent=1 // pred_fallthru
      _
    // Predicated region
    $region62: #{luong_attn_decoder_step.2} parent=1 // pred_check
      _
    $region63: #{luong_attn_decoder_step.2} parent=1 // pred_check_branch
      %2225 = sbr.rel (0) target = $region65
    $region64: #{luong_attn_decoder_step.2} parent=1 // pred_region
      _
    $region65: #{luong_attn_decoder_step.2} parent=1 // pred_fallthru
      _
    %2226 = vsyncpa [#allocation3], 1
    %2227 = vsyncpa [#allocation5], 1

</llo_original>
